<compile_context>
chip_gen: v6e
topology: v6e:2x2x1
jax: 0.10.0
libtpu: 0.0.40
codegen_flags: <defaults>
</compile_context>

<pallas_src>
import jax
import jax.numpy as jnp
from jax.experimental import pallas as pl
from jax.experimental.pallas import tpu as pltpu

HIDDEN = 8                 # LSTM hidden size (fixed by the module)
D1 = 5                     # first/second dense width
D_OUT = 1                  # output width
G4 = 4 * HIDDEN            # 32 gate columns

# packed dense-head layout: one (HEAD_ROWS, HEAD_COLS) f32 array
_W1_R = 0                  # rows [0:8),  cols [0:5)  -> W1^T (8,5)
_W2_R = HIDDEN             # rows [8:13), cols [0:5)  -> W2^T (5,5)
_B1_R = _W2_R + D1         # row 13,      cols [0:5)  -> b1
_B2_R = _B1_R + 1          # row 14,      cols [0:5)  -> b2
_B3_R = _B2_R + 1          # row 15,      col 0       -> b3
_W3_R = 16                 # rows [16:21), col 0      -> W3^T (5,1)
HEAD_ROWS, HEAD_COLS = 24, 8


def _build_kernel(B, T, F):
    FH = F + HIDDEN

    def kernel(x_ref, lstmw_ref, head_ref, o_ref, xg_ref, hs_ref):
        # ---------- hoisted parameter slices (loaded once, outside the time loop) ----
        w_x = lstmw_ref[0:F, :]              # (F, 4H)   = W_ih^T
        w_h = lstmw_ref[F:FH, :]             # (H, 4H)   = W_hh^T
        b_row = lstmw_ref[FH:FH + 1, :]      # (1, 4H)   = b_ih + b_hh

        # ---------- precompute input-side gate contributions for ALL timesteps -------
        # B static, well-shaped (T, F) x (F, 4H) matmuls instead of T tiny per-step
        # ones; stored time-major so the recurrence indexes the leading axis cheaply.
        for b in range(B):                   # B is a small static constant
            xg_ref[:, b, :] = (
                jnp.dot(x_ref[b], w_x, preferred_element_type=jnp.float32) + b_row)

        # ---------- sequential LSTM recurrence; h / c are loop-carried vregs ---------
        def step(t, carry):
            h, c = carry
            gates = xg_ref[t] + jnp.dot(h, w_h, preferred_element_type=jnp.float32)
            sg = jax.nn.sigmoid(gates)       # full-row EUP ops, then static lane slices
            tg = jnp.tanh(gates)
            i_g = sg[:, 0 * HIDDEN:1 * HIDDEN]
            f_g = sg[:, 1 * HIDDEN:2 * HIDDEN]
            g_g = tg[:, 2 * HIDDEN:3 * HIDDEN]
            o_g = sg[:, 3 * HIDDEN:4 * HIDDEN]
            c_new = f_g * c + i_g * g_g
            h_new = o_g * jnp.tanh(c_new)
            hs_ref[t] = h_new                # save hidden state for the batched head
            return (h_new, c_new)

        h0 = jnp.zeros((B, HIDDEN), jnp.float32)
        jax.lax.fori_loop(0, T, step, (h0, h0), unroll=(T <= 32))

        # ---------- time-independent MLP head, batched over all (b, t) rows ----------
        # rows ordered b*T + t so the wrapper only needs a free reshape to (B, T, 1)
        hm = jnp.concatenate([hs_ref[:, b, :] for b in range(B)], axis=0)  # (B*T, H)

        w1 = head_ref[_W1_R:_W1_R + HIDDEN, 0:D1]
        w2 = head_ref[_W2_R:_W2_R + D1, 0:D1]
        w3 = head_ref[_W3_R:_W3_R + D1, 0:D_OUT]
        b1 = head_ref[_B1_R:_B1_R + 1, 0:D1]
        b2 = head_ref[_B2_R:_B2_R + 1, 0:D1]
        b3 = head_ref[_B3_R:_B3_R + 1, 0:D_OUT]

        z = jnp.maximum(hm, 0.0)
        z = jnp.maximum(jnp.dot(z, w1, preferred_element_type=jnp.float32) + b1, 0.0)
        z = jnp.maximum(jnp.dot(z, w2, preferred_element_type=jnp.float32) + b2, 0.0)
        z = jnp.dot(z, w3, preferred_element_type=jnp.float32) + b3       # (B*T, 1)
        o_ref[...] = z                        # single store at the end

    return kernel


def their_density_regressor(x, params):
    """x: (B, T, F) float32  ->  (B, T, 1) float32."""
    lstm_w, head_w = params
    B, T, F = x.shape
    x = x.astype(jnp.float32)

    vmem = lambda: pl.BlockSpec(memory_space=pltpu.MemorySpace.VMEM)
    out_flat = pl.pallas_call(
        _build_kernel(B, T, F),
        out_shape=jax.ShapeDtypeStruct((B * T, D_OUT), jnp.float32),
        in_specs=[vmem(), vmem(), vmem()],
        out_specs=vmem(),
        scratch_shapes=[
            pltpu.VMEM((T, B, G4), jnp.float32),      # xg: precomputed input gates + bias
            pltpu.VMEM((T, B, HIDDEN), jnp.float32),  # hs: hidden-state history
        ],
    )(x, lstm_w, head_w)

    # rows are ordered (b, t): a free reshape, no transpose / extra HBM pass
    return out_flat.reshape(B, T, D_OUT)


def init_params(key, n_input_features):
    F = n_input_features
    ks = jax.random.split(key, 8)
    s = 0.25
    w_ih = s * jax.random.normal(ks[0], (G4, F), jnp.float32)
    w_hh = s * jax.random.normal(ks[1], (G4, HIDDEN), jnp.float32)
    b_ih = s * jax.random.normal(ks[2], (G4,), jnp.float32)
    b_hh = s * jax.random.normal(ks[3], (G4,), jnp.float32)
    w1 = s * jax.random.normal(ks[4], (D1, HIDDEN), jnp.float32)
    b1 = jnp.linspace(-0.1, 0.1, D1, dtype=jnp.float32)
    w2 = s * jax.random.normal(ks[5], (D1, D1), jnp.float32)
    b2 = jnp.linspace(0.05, -0.05, D1, dtype=jnp.float32)
    w3 = s * jax.random.normal(ks[6], (D_OUT, D1), jnp.float32)
    b3 = jnp.array([0.02], dtype=jnp.float32)

    # pack LSTM params: rows [0:F)=W_ih^T, [F:F+H)=W_hh^T, row F+H = b_ih + b_hh
    lstm_w = jnp.zeros((F + HIDDEN + 1, G4), jnp.float32)
    lstm_w = lstm_w.at[0:F, :].set(w_ih.T)
    lstm_w = lstm_w.at[F:F + HIDDEN, :].set(w_hh.T)
    lstm_w = lstm_w.at[F + HIDDEN, :].set(b_ih + b_hh)

    # pack dense-head params into one small array
    head = jnp.zeros((HEAD_ROWS, HEAD_COLS), jnp.float32)
    head = head.at[_W1_R:_W1_R + HIDDEN, 0:D1].set(w1.T)
    head = head.at[_W2_R:_W2_R + D1, 0:D1].set(w2.T)
    head = head.at[_B1_R, 0:D1].set(b1)
    head = head.at[_B2_R, 0:D1].set(b2)
    head = head.at[_B3_R, 0:D_OUT].set(b3)
    head = head.at[_W3_R:_W3_R + D1, 0:D_OUT].set(w3.T)

    return (lstm_w, head)


def reference_forward(x, params):
    """Pure-JAX reference of the same forward pass (for verification)."""
    lstm_w, head = params
    B, T, F = x.shape
    w_x = lstm_w[0:F, :]
    w_h = lstm_w[F:F + HIDDEN, :]
    b = lstm_w[F + HIDDEN, :][None, :]
    w1 = head[_W1_R:_W1_R + HIDDEN, 0:D1]
    w2 = head[_W2_R:_W2_R + D1, 0:D1]
    w3 = head[_W3_R:_W3_R + D1, 0:D_OUT]
    b1 = head[_B1_R, 0:D1][None, :]
    b2 = head[_B2_R, 0:D1][None, :]
    b3 = head[_B3_R, 0:D_OUT][None, :]

    def step(carry, x_t):
        h, c = carry
        gates = x_t @ w_x + b + h @ w_h
        i = jax.nn.sigmoid(gates[:, 0 * HIDDEN:1 * HIDDEN])
        f = jax.nn.sigmoid(gates[:, 1 * HIDDEN:2 * HIDDEN])
        g = jnp.tanh(gates[:, 2 * HIDDEN:3 * HIDDEN])
        o = jax.nn.sigmoid(gates[:, 3 * HIDDEN:4 * HIDDEN])
        c = f * c + i * g
        h = o * jnp.tanh(c)
        return (h, c), h

    h0 = jnp.zeros((B, HIDDEN), jnp.float32)
    _, hs = jax.lax.scan(step, (h0, h0), jnp.transpose(x, (1, 0, 2)))   # (T, B, H)
    z = jnp.maximum(hs, 0.0)
    z = jnp.maximum(z @ w1 + b1, 0.0)
    z = jnp.maximum(z @ w2 + b2, 0.0)
    z = z @ w3 + b3                                                     # (T, B, 1)
    return jnp.transpose(z, (1, 0, 2))                                  # (B, T, 1)


if __name__ == "__main__":
    key = jax.random.PRNGKey(0)
    k_x, k_p = jax.random.split(key)

    B, T, F = 2, 8, 4                      # batch, seq, n_input_features
    x = jax.random.normal(k_x, (B, T, F), jnp.float32)
    params = init_params(k_p, F)

    out = their_density_regressor(x, params)
    out = jax.block_until_ready(out)

    ref = reference_forward(x, params)
    assert out.shape == (B, T, 1), out.shape
    err = float(jnp.max(jnp.abs(out - ref)))
    assert jnp.allclose(out, ref, atol=1e-5, rtol=1e-5), f"max err {err}"

    print("KERNEL_OK")
</pallas_src>

<mosaic_0001>
module attributes {stable_mosaic.version = 11 : i64} {
  func.func @kernel(%arg0: memref<2x8x4xf32, #tpu.memory_space<vmem>>, %arg1: memref<13x32xf32, #tpu.memory_space<vmem>>, %arg2: memref<24x8xf32, #tpu.memory_space<vmem>>, %arg3: memref<16x1xf32, #tpu.memory_space<vmem>>, %arg4: memref<8x2x32xf32, #tpu.memory_space<vmem>>, %arg5: memref<8x2x8xf32, #tpu.memory_space<vmem>>) attributes {dimension_semantics = [], scalar_prefetch = 0 : i64, scratch_operands = 2 : i64, tpu.core_type = #tpu.core_type<tc>} {
    %c0 = arith.constant 0 : index
    %c0_0 = arith.constant 0 : index
    %0 = vector.load %arg1[%c0, %c0_0] : memref<13x32xf32, #tpu.memory_space<vmem>>, vector<4x32xf32>
    %c4 = arith.constant 4 : index
    %c0_1 = arith.constant 0 : index
    %1 = vector.load %arg1[%c4, %c0_1] : memref<13x32xf32, #tpu.memory_space<vmem>>, vector<8x32xf32>
    %c12 = arith.constant 12 : index
    %c0_2 = arith.constant 0 : index
    %2 = vector.load %arg1[%c12, %c0_2] : memref<13x32xf32, #tpu.memory_space<vmem>>, vector<1x32xf32>
    %c0_3 = arith.constant 0 : index
    %c0_4 = arith.constant 0 : index
    %c0_5 = arith.constant 0 : index
    %3 = vector.load %arg0[%c0_3, %c0_4, %c0_5] : memref<2x8x4xf32, #tpu.memory_space<vmem>>, vector<1x8x4xf32>
    %4 = vector.shape_cast %3 : vector<1x8x4xf32> to vector<8x4xf32>
    %cst = arith.constant dense<0.000000e+00> : vector<8x32xf32>
    %5 = tpu.matmul %4, %0, %cst {dimension_numbers = #tpu.dot_dimension_numbers<[1], [0], [0], [1], [0, 0, 1, 1], [], []>} : vector<8x4xf32>, vector<4x32xf32>, vector<8x32xf32> -> vector<8x32xf32>
    %6 = vector.broadcast %2 : vector<1x32xf32> to vector<8x32xf32>
    %7 = arith.addf %5, %6 : vector<8x32xf32>
    %c0_6 = arith.constant 0 : index
    %c0_7 = arith.constant 0 : index
    %c0_8 = arith.constant 0 : index
    %8 = vector.load %arg4[%c0_6, %c0_7, %c0_8] : memref<8x2x32xf32, #tpu.memory_space<vmem>>, vector<8x1x32xf32>
    %9 = vector.shape_cast %8 : vector<8x1x32xf32> to vector<8x32xf32>
    %10 = vector.shape_cast %7 : vector<8x32xf32> to vector<8x1x32xf32>
    tpu.vector_store %arg4[%c0_6, %c0_7, %c0_8], %10 {strides = array<i32>} : memref<8x2x32xf32, #tpu.memory_space<vmem>>, vector<8x1x32xf32>,
    %c1 = arith.constant 1 : index
    %c0_9 = arith.constant 0 : index
    %c0_10 = arith.constant 0 : index
    %11 = vector.load %arg0[%c1, %c0_9, %c0_10] : memref<2x8x4xf32, #tpu.memory_space<vmem>>, vector<1x8x4xf32>
    %12 = vector.shape_cast %11 : vector<1x8x4xf32> to vector<8x4xf32>
    %cst_11 = arith.constant dense<0.000000e+00> : vector<8x32xf32>
    %13 = tpu.matmul %12, %0, %cst_11 {dimension_numbers = #tpu.dot_dimension_numbers<[1], [0], [0], [1], [0, 0, 1, 1], [], []>} : vector<8x4xf32>, vector<4x32xf32>, vector<8x32xf32> -> vector<8x32xf32>
    %14 = vector.broadcast %2 : vector<1x32xf32> to vector<8x32xf32>
    %15 = arith.addf %13, %14 : vector<8x32xf32>
    %c0_12 = arith.constant 0 : index
    %c1_13 = arith.constant 1 : index
    %c0_14 = arith.constant 0 : index
    %16 = vector.load %arg4[%c0_12, %c1_13, %c0_14] : memref<8x2x32xf32, #tpu.memory_space<vmem>>, vector<8x1x32xf32>
    %17 = vector.shape_cast %16 : vector<8x1x32xf32> to vector<8x32xf32>
    %18 = vector.shape_cast %15 : vector<8x32xf32> to vector<8x1x32xf32>
    tpu.vector_store %arg4[%c0_12, %c1_13, %c0_14], %18 {strides = array<i32>} : memref<8x2x32xf32, #tpu.memory_space<vmem>>, vector<8x1x32xf32>,
    %cst_15 = arith.constant 0.000000e+00 : f32
    %19 = vector.broadcast %cst_15 : f32 to vector<2x8xf32>
    %c0_i32 = arith.constant 0 : i32
    %20 = arith.index_cast %c0_i32 : i32 to index
    %c0_16 = arith.constant 0 : index
    %c0_17 = arith.constant 0 : index
    %21 = vector.load %arg4[%20, %c0_16, %c0_17] : memref<8x2x32xf32, #tpu.memory_space<vmem>>, vector<1x2x32xf32>
    %22 = vector.shape_cast %21 : vector<1x2x32xf32> to vector<2x32xf32>
    %cst_18 = arith.constant dense<0.000000e+00> : vector<2x32xf32>
    %23 = tpu.matmul %19, %1, %cst_18 {dimension_numbers = #tpu.dot_dimension_numbers<[1], [0], [0], [1], [0, 0, 1, 1], [], []>} : vector<2x8xf32>, vector<8x32xf32>, vector<2x32xf32> -> vector<2x32xf32>
    %24 = arith.addf %22, %23 : vector<2x32xf32>
    %25 = arith.negf %24 : vector<2x32xf32>
    %26 = math.exp %25 : vector<2x32xf32>
    %cst_19 = arith.constant 1.000000e+00 : f32
    %27 = vector.broadcast %cst_19 : f32 to vector<2x32xf32>
    %28 = arith.addf %27, %26 : vector<2x32xf32>
    %29 = arith.divf %27, %28 : vector<2x32xf32>
    %30 = math.tanh %24 : vector<2x32xf32>
    %31 = vector.extract_strided_slice %29 {offsets = [0, 0], sizes = [2, 8], strides = [1, 1]} : vector<2x32xf32> to vector<2x8xf32>
    %32 = vector.extract_strided_slice %29 {offsets = [0, 8], sizes = [2, 8], strides = [1, 1]} : vector<2x32xf32> to vector<2x8xf32>
    %33 = vector.extract_strided_slice %30 {offsets = [0, 16], sizes = [2, 8], strides = [1, 1]} : vector<2x32xf32> to vector<2x8xf32>
    %34 = vector.extract_strided_slice %29 {offsets = [0, 24], sizes = [2, 8], strides = [1, 1]} : vector<2x32xf32> to vector<2x8xf32>
    %35 = arith.mulf %32, %19 : vector<2x8xf32>
    %36 = arith.mulf %31, %33 : vector<2x8xf32>
    %37 = arith.addf %35, %36 : vector<2x8xf32>
    %38 = math.tanh %37 : vector<2x8xf32>
    %39 = arith.mulf %34, %38 : vector<2x8xf32>
    %40 = arith.index_cast %c0_i32 : i32 to index
    %c0_20 = arith.constant 0 : index
    %c0_21 = arith.constant 0 : index
    %41 = vector.load %arg5[%40, %c0_20, %c0_21] : memref<8x2x8xf32, #tpu.memory_space<vmem>>, vector<1x2x8xf32>
    %42 = vector.shape_cast %41 : vector<1x2x8xf32> to vector<2x8xf32>
    %43 = vector.shape_cast %39 : vector<2x8xf32> to vector<1x2x8xf32>
    tpu.vector_store %arg5[%40, %c0_20, %c0_21], %43 {strides = array<i32>} : memref<8x2x8xf32, #tpu.memory_space<vmem>>, vector<1x2x8xf32>,
    %c1_i32 = arith.constant 1 : i32
    %44 = arith.index_cast %c1_i32 : i32 to index
    %c0_22 = arith.constant 0 : index
    %c0_23 = arith.constant 0 : index
    %45 = vector.load %arg4[%44, %c0_22, %c0_23] : memref<8x2x32xf32, #tpu.memory_space<vmem>>, vector<1x2x32xf32>
    %46 = vector.shape_cast %45 : vector<1x2x32xf32> to vector<2x32xf32>
    %cst_24 = arith.constant dense<0.000000e+00> : vector<2x32xf32>
    %47 = tpu.matmul %39, %1, %cst_24 {dimension_numbers = #tpu.dot_dimension_numbers<[1], [0], [0], [1], [0, 0, 1, 1], [], []>} : vector<2x8xf32>, vector<8x32xf32>, vector<2x32xf32> -> vector<2x32xf32>
    %48 = arith.addf %46, %47 : vector<2x32xf32>
    %49 = arith.negf %48 : vector<2x32xf32>
    %50 = math.exp %49 : vector<2x32xf32>
    %cst_25 = arith.constant 1.000000e+00 : f32
    %51 = vector.broadcast %cst_25 : f32 to vector<2x32xf32>
    %52 = arith.addf %51, %50 : vector<2x32xf32>
    %53 = arith.divf %51, %52 : vector<2x32xf32>
    %54 = math.tanh %48 : vector<2x32xf32>
    %55 = vector.extract_strided_slice %53 {offsets = [0, 0], sizes = [2, 8], strides = [1, 1]} : vector<2x32xf32> to vector<2x8xf32>
    %56 = vector.extract_strided_slice %53 {offsets = [0, 8], sizes = [2, 8], strides = [1, 1]} : vector<2x32xf32> to vector<2x8xf32>
    %57 = vector.extract_strided_slice %54 {offsets = [0, 16], sizes = [2, 8], strides = [1, 1]} : vector<2x32xf32> to vector<2x8xf32>
    %58 = vector.extract_strided_slice %53 {offsets = [0, 24], sizes = [2, 8], strides = [1, 1]} : vector<2x32xf32> to vector<2x8xf32>
    %59 = arith.mulf %56, %37 : vector<2x8xf32>
    %60 = arith.mulf %55, %57 : vector<2x8xf32>
    %61 = arith.addf %59, %60 : vector<2x8xf32>
    %62 = math.tanh %61 : vector<2x8xf32>
    %63 = arith.mulf %58, %62 : vector<2x8xf32>
    %64 = arith.index_cast %c1_i32 : i32 to index
    %c0_26 = arith.constant 0 : index
    %c0_27 = arith.constant 0 : index
    %65 = vector.load %arg5[%64, %c0_26, %c0_27] : memref<8x2x8xf32, #tpu.memory_space<vmem>>, vector<1x2x8xf32>
    %66 = vector.shape_cast %65 : vector<1x2x8xf32> to vector<2x8xf32>
    %67 = vector.shape_cast %63 : vector<2x8xf32> to vector<1x2x8xf32>
    tpu.vector_store %arg5[%64, %c0_26, %c0_27], %67 {strides = array<i32>} : memref<8x2x8xf32, #tpu.memory_space<vmem>>, vector<1x2x8xf32>,
    %c2_i32 = arith.constant 2 : i32
    %68 = arith.index_cast %c2_i32 : i32 to index
    %c0_28 = arith.constant 0 : index
    %c0_29 = arith.constant 0 : index
    %69 = vector.load %arg4[%68, %c0_28, %c0_29] : memref<8x2x32xf32, #tpu.memory_space<vmem>>, vector<1x2x32xf32>
    %70 = vector.shape_cast %69 : vector<1x2x32xf32> to vector<2x32xf32>
    %cst_30 = arith.constant dense<0.000000e+00> : vector<2x32xf32>
    %71 = tpu.matmul %63, %1, %cst_30 {dimension_numbers = #tpu.dot_dimension_numbers<[1], [0], [0], [1], [0, 0, 1, 1], [], []>} : vector<2x8xf32>, vector<8x32xf32>, vector<2x32xf32> -> vector<2x32xf32>
    %72 = arith.addf %70, %71 : vector<2x32xf32>
    %73 = arith.negf %72 : vector<2x32xf32>
    %74 = math.exp %73 : vector<2x32xf32>
    %cst_31 = arith.constant 1.000000e+00 : f32
    %75 = vector.broadcast %cst_31 : f32 to vector<2x32xf32>
    %76 = arith.addf %75, %74 : vector<2x32xf32>
    %77 = arith.divf %75, %76 : vector<2x32xf32>
    %78 = math.tanh %72 : vector<2x32xf32>
    %79 = vector.extract_strided_slice %77 {offsets = [0, 0], sizes = [2, 8], strides = [1, 1]} : vector<2x32xf32> to vector<2x8xf32>
    %80 = vector.extract_strided_slice %77 {offsets = [0, 8], sizes = [2, 8], strides = [1, 1]} : vector<2x32xf32> to vector<2x8xf32>
    %81 = vector.extract_strided_slice %78 {offsets = [0, 16], sizes = [2, 8], strides = [1, 1]} : vector<2x32xf32> to vector<2x8xf32>
    %82 = vector.extract_strided_slice %77 {offsets = [0, 24], sizes = [2, 8], strides = [1, 1]} : vector<2x32xf32> to vector<2x8xf32>
    %83 = arith.mulf %80, %61 : vector<2x8xf32>
    %84 = arith.mulf %79, %81 : vector<2x8xf32>
    %85 = arith.addf %83, %84 : vector<2x8xf32>
    %86 = math.tanh %85 : vector<2x8xf32>
    %87 = arith.mulf %82, %86 : vector<2x8xf32>
    %88 = arith.index_cast %c2_i32 : i32 to index
    %c0_32 = arith.constant 0 : index
    %c0_33 = arith.constant 0 : index
    %89 = vector.load %arg5[%88, %c0_32, %c0_33] : memref<8x2x8xf32, #tpu.memory_space<vmem>>, vector<1x2x8xf32>
    %90 = vector.shape_cast %89 : vector<1x2x8xf32> to vector<2x8xf32>
    %91 = vector.shape_cast %87 : vector<2x8xf32> to vector<1x2x8xf32>
    tpu.vector_store %arg5[%88, %c0_32, %c0_33], %91 {strides = array<i32>} : memref<8x2x8xf32, #tpu.memory_space<vmem>>, vector<1x2x8xf32>,
    %c3_i32 = arith.constant 3 : i32
    %92 = arith.index_cast %c3_i32 : i32 to index
    %c0_34 = arith.constant 0 : index
    %c0_35 = arith.constant 0 : index
    %93 = vector.load %arg4[%92, %c0_34, %c0_35] : memref<8x2x32xf32, #tpu.memory_space<vmem>>, vector<1x2x32xf32>
    %94 = vector.shape_cast %93 : vector<1x2x32xf32> to vector<2x32xf32>
    %cst_36 = arith.constant dense<0.000000e+00> : vector<2x32xf32>
    %95 = tpu.matmul %87, %1, %cst_36 {dimension_numbers = #tpu.dot_dimension_numbers<[1], [0], [0], [1], [0, 0, 1, 1], [], []>} : vector<2x8xf32>, vector<8x32xf32>, vector<2x32xf32> -> vector<2x32xf32>
    %96 = arith.addf %94, %95 : vector<2x32xf32>
    %97 = arith.negf %96 : vector<2x32xf32>
    %98 = math.exp %97 : vector<2x32xf32>
    %cst_37 = arith.constant 1.000000e+00 : f32
    %99 = vector.broadcast %cst_37 : f32 to vector<2x32xf32>
    %100 = arith.addf %99, %98 : vector<2x32xf32>
    %101 = arith.divf %99, %100 : vector<2x32xf32>
    %102 = math.tanh %96 : vector<2x32xf32>
    %103 = vector.extract_strided_slice %101 {offsets = [0, 0], sizes = [2, 8], strides = [1, 1]} : vector<2x32xf32> to vector<2x8xf32>
    %104 = vector.extract_strided_slice %101 {offsets = [0, 8], sizes = [2, 8], strides = [1, 1]} : vector<2x32xf32> to vector<2x8xf32>
    %105 = vector.extract_strided_slice %102 {offsets = [0, 16], sizes = [2, 8], strides = [1, 1]} : vector<2x32xf32> to vector<2x8xf32>
    %106 = vector.extract_strided_slice %101 {offsets = [0, 24], sizes = [2, 8], strides = [1, 1]} : vector<2x32xf32> to vector<2x8xf32>
    %107 = arith.mulf %104, %85 : vector<2x8xf32>
    %108 = arith.mulf %103, %105 : vector<2x8xf32>
    %109 = arith.addf %107, %108 : vector<2x8xf32>
    %110 = math.tanh %109 : vector<2x8xf32>
    %111 = arith.mulf %106, %110 : vector<2x8xf32>
    %112 = arith.index_cast %c3_i32 : i32 to index
    %c0_38 = arith.constant 0 : index
    %c0_39 = arith.constant 0 : index
    %113 = vector.load %arg5[%112, %c0_38, %c0_39] : memref<8x2x8xf32, #tpu.memory_space<vmem>>, vector<1x2x8xf32>
    %114 = vector.shape_cast %113 : vector<1x2x8xf32> to vector<2x8xf32>
    %115 = vector.shape_cast %111 : vector<2x8xf32> to vector<1x2x8xf32>
    tpu.vector_store %arg5[%112, %c0_38, %c0_39], %115 {strides = array<i32>} : memref<8x2x8xf32, #tpu.memory_space<vmem>>, vector<1x2x8xf32>,
    %c4_i32 = arith.constant 4 : i32
    %116 = arith.index_cast %c4_i32 : i32 to index
    %c0_40 = arith.constant 0 : index
    %c0_41 = arith.constant 0 : index
    %117 = vector.load %arg4[%116, %c0_40, %c0_41] : memref<8x2x32xf32, #tpu.memory_space<vmem>>, vector<1x2x32xf32>
    %118 = vector.shape_cast %117 : vector<1x2x32xf32> to vector<2x32xf32>
    %cst_42 = arith.constant dense<0.000000e+00> : vector<2x32xf32>
    %119 = tpu.matmul %111, %1, %cst_42 {dimension_numbers = #tpu.dot_dimension_numbers<[1], [0], [0], [1], [0, 0, 1, 1], [], []>} : vector<2x8xf32>, vector<8x32xf32>, vector<2x32xf32> -> vector<2x32xf32>
    %120 = arith.addf %118, %119 : vector<2x32xf32>
    %121 = arith.negf %120 : vector<2x32xf32>
    %122 = math.exp %121 : vector<2x32xf32>
    %cst_43 = arith.constant 1.000000e+00 : f32
    %123 = vector.broadcast %cst_43 : f32 to vector<2x32xf32>
    %124 = arith.addf %123, %122 : vector<2x32xf32>
    %125 = arith.divf %123, %124 : vector<2x32xf32>
    %126 = math.tanh %120 : vector<2x32xf32>
    %127 = vector.extract_strided_slice %125 {offsets = [0, 0], sizes = [2, 8], strides = [1, 1]} : vector<2x32xf32> to vector<2x8xf32>
    %128 = vector.extract_strided_slice %125 {offsets = [0, 8], sizes = [2, 8], strides = [1, 1]} : vector<2x32xf32> to vector<2x8xf32>
    %129 = vector.extract_strided_slice %126 {offsets = [0, 16], sizes = [2, 8], strides = [1, 1]} : vector<2x32xf32> to vector<2x8xf32>
    %130 = vector.extract_strided_slice %125 {offsets = [0, 24], sizes = [2, 8], strides = [1, 1]} : vector<2x32xf32> to vector<2x8xf32>
    %131 = arith.mulf %128, %109 : vector<2x8xf32>
    %132 = arith.mulf %127, %129 : vector<2x8xf32>
    %133 = arith.addf %131, %132 : vector<2x8xf32>
    %134 = math.tanh %133 : vector<2x8xf32>
    %135 = arith.mulf %130, %134 : vector<2x8xf32>
    %136 = arith.index_cast %c4_i32 : i32 to index
    %c0_44 = arith.constant 0 : index
    %c0_45 = arith.constant 0 : index
    %137 = vector.load %arg5[%136, %c0_44, %c0_45] : memref<8x2x8xf32, #tpu.memory_space<vmem>>, vector<1x2x8xf32>
    %138 = vector.shape_cast %137 : vector<1x2x8xf32> to vector<2x8xf32>
    %139 = vector.shape_cast %135 : vector<2x8xf32> to vector<1x2x8xf32>
    tpu.vector_store %arg5[%136, %c0_44, %c0_45], %139 {strides = array<i32>} : memref<8x2x8xf32, #tpu.memory_space<vmem>>, vector<1x2x8xf32>,
    %c5_i32 = arith.constant 5 : i32
    %140 = arith.index_cast %c5_i32 : i32 to index
    %c0_46 = arith.constant 0 : index
    %c0_47 = arith.constant 0 : index
    %141 = vector.load %arg4[%140, %c0_46, %c0_47] : memref<8x2x32xf32, #tpu.memory_space<vmem>>, vector<1x2x32xf32>
    %142 = vector.shape_cast %141 : vector<1x2x32xf32> to vector<2x32xf32>
    %cst_48 = arith.constant dense<0.000000e+00> : vector<2x32xf32>
    %143 = tpu.matmul %135, %1, %cst_48 {dimension_numbers = #tpu.dot_dimension_numbers<[1], [0], [0], [1], [0, 0, 1, 1], [], []>} : vector<2x8xf32>, vector<8x32xf32>, vector<2x32xf32> -> vector<2x32xf32>
    %144 = arith.addf %142, %143 : vector<2x32xf32>
    %145 = arith.negf %144 : vector<2x32xf32>
    %146 = math.exp %145 : vector<2x32xf32>
    %cst_49 = arith.constant 1.000000e+00 : f32
    %147 = vector.broadcast %cst_49 : f32 to vector<2x32xf32>
    %148 = arith.addf %147, %146 : vector<2x32xf32>
    %149 = arith.divf %147, %148 : vector<2x32xf32>
    %150 = math.tanh %144 : vector<2x32xf32>
    %151 = vector.extract_strided_slice %149 {offsets = [0, 0], sizes = [2, 8], strides = [1, 1]} : vector<2x32xf32> to vector<2x8xf32>
    %152 = vector.extract_strided_slice %149 {offsets = [0, 8], sizes = [2, 8], strides = [1, 1]} : vector<2x32xf32> to vector<2x8xf32>
    %153 = vector.extract_strided_slice %150 {offsets = [0, 16], sizes = [2, 8], strides = [1, 1]} : vector<2x32xf32> to vector<2x8xf32>
    %154 = vector.extract_strided_slice %149 {offsets = [0, 24], sizes = [2, 8], strides = [1, 1]} : vector<2x32xf32> to vector<2x8xf32>
    %155 = arith.mulf %152, %133 : vector<2x8xf32>
    %156 = arith.mulf %151, %153 : vector<2x8xf32>
    %157 = arith.addf %155, %156 : vector<2x8xf32>
    %158 = math.tanh %157 : vector<2x8xf32>
    %159 = arith.mulf %154, %158 : vector<2x8xf32>
    %160 = arith.index_cast %c5_i32 : i32 to index
    %c0_50 = arith.constant 0 : index
    %c0_51 = arith.constant 0 : index
    %161 = vector.load %arg5[%160, %c0_50, %c0_51] : memref<8x2x8xf32, #tpu.memory_space<vmem>>, vector<1x2x8xf32>
    %162 = vector.shape_cast %161 : vector<1x2x8xf32> to vector<2x8xf32>
    %163 = vector.shape_cast %159 : vector<2x8xf32> to vector<1x2x8xf32>
    tpu.vector_store %arg5[%160, %c0_50, %c0_51], %163 {strides = array<i32>} : memref<8x2x8xf32, #tpu.memory_space<vmem>>, vector<1x2x8xf32>,
    %c6_i32 = arith.constant 6 : i32
    %164 = arith.index_cast %c6_i32 : i32 to index
    %c0_52 = arith.constant 0 : index
    %c0_53 = arith.constant 0 : index
    %165 = vector.load %arg4[%164, %c0_52, %c0_53] : memref<8x2x32xf32, #tpu.memory_space<vmem>>, vector<1x2x32xf32>
    %166 = vector.shape_cast %165 : vector<1x2x32xf32> to vector<2x32xf32>
    %cst_54 = arith.constant dense<0.000000e+00> : vector<2x32xf32>
    %167 = tpu.matmul %159, %1, %cst_54 {dimension_numbers = #tpu.dot_dimension_numbers<[1], [0], [0], [1], [0, 0, 1, 1], [], []>} : vector<2x8xf32>, vector<8x32xf32>, vector<2x32xf32> -> vector<2x32xf32>
    %168 = arith.addf %166, %167 : vector<2x32xf32>
    %169 = arith.negf %168 : vector<2x32xf32>
    %170 = math.exp %169 : vector<2x32xf32>
    %cst_55 = arith.constant 1.000000e+00 : f32
    %171 = vector.broadcast %cst_55 : f32 to vector<2x32xf32>
    %172 = arith.addf %171, %170 : vector<2x32xf32>
    %173 = arith.divf %171, %172 : vector<2x32xf32>
    %174 = math.tanh %168 : vector<2x32xf32>
    %175 = vector.extract_strided_slice %173 {offsets = [0, 0], sizes = [2, 8], strides = [1, 1]} : vector<2x32xf32> to vector<2x8xf32>
    %176 = vector.extract_strided_slice %173 {offsets = [0, 8], sizes = [2, 8], strides = [1, 1]} : vector<2x32xf32> to vector<2x8xf32>
    %177 = vector.extract_strided_slice %174 {offsets = [0, 16], sizes = [2, 8], strides = [1, 1]} : vector<2x32xf32> to vector<2x8xf32>
    %178 = vector.extract_strided_slice %173 {offsets = [0, 24], sizes = [2, 8], strides = [1, 1]} : vector<2x32xf32> to vector<2x8xf32>
    %179 = arith.mulf %176, %157 : vector<2x8xf32>
    %180 = arith.mulf %175, %177 : vector<2x8xf32>
    %181 = arith.addf %179, %180 : vector<2x8xf32>
    %182 = math.tanh %181 : vector<2x8xf32>
    %183 = arith.mulf %178, %182 : vector<2x8xf32>
    %184 = arith.index_cast %c6_i32 : i32 to index
    %c0_56 = arith.constant 0 : index
    %c0_57 = arith.constant 0 : index
    %185 = vector.load %arg5[%184, %c0_56, %c0_57] : memref<8x2x8xf32, #tpu.memory_space<vmem>>, vector<1x2x8xf32>
    %186 = vector.shape_cast %185 : vector<1x2x8xf32> to vector<2x8xf32>
    %187 = vector.shape_cast %183 : vector<2x8xf32> to vector<1x2x8xf32>
    tpu.vector_store %arg5[%184, %c0_56, %c0_57], %187 {strides = array<i32>} : memref<8x2x8xf32, #tpu.memory_space<vmem>>, vector<1x2x8xf32>,
    %c7_i32 = arith.constant 7 : i32
    %188 = arith.index_cast %c7_i32 : i32 to index
    %c0_58 = arith.constant 0 : index
    %c0_59 = arith.constant 0 : index
    %189 = vector.load %arg4[%188, %c0_58, %c0_59] : memref<8x2x32xf32, #tpu.memory_space<vmem>>, vector<1x2x32xf32>
    %190 = vector.shape_cast %189 : vector<1x2x32xf32> to vector<2x32xf32>
    %cst_60 = arith.constant dense<0.000000e+00> : vector<2x32xf32>
    %191 = tpu.matmul %183, %1, %cst_60 {dimension_numbers = #tpu.dot_dimension_numbers<[1], [0], [0], [1], [0, 0, 1, 1], [], []>} : vector<2x8xf32>, vector<8x32xf32>, vector<2x32xf32> -> vector<2x32xf32>
    %192 = arith.addf %190, %191 : vector<2x32xf32>
    %193 = arith.negf %192 : vector<2x32xf32>
    %194 = math.exp %193 : vector<2x32xf32>
    %cst_61 = arith.constant 1.000000e+00 : f32
    %195 = vector.broadcast %cst_61 : f32 to vector<2x32xf32>
    %196 = arith.addf %195, %194 : vector<2x32xf32>
    %197 = arith.divf %195, %196 : vector<2x32xf32>
    %198 = math.tanh %192 : vector<2x32xf32>
    %199 = vector.extract_strided_slice %197 {offsets = [0, 0], sizes = [2, 8], strides = [1, 1]} : vector<2x32xf32> to vector<2x8xf32>
    %200 = vector.extract_strided_slice %197 {offsets = [0, 8], sizes = [2, 8], strides = [1, 1]} : vector<2x32xf32> to vector<2x8xf32>
    %201 = vector.extract_strided_slice %198 {offsets = [0, 16], sizes = [2, 8], strides = [1, 1]} : vector<2x32xf32> to vector<2x8xf32>
    %202 = vector.extract_strided_slice %197 {offsets = [0, 24], sizes = [2, 8], strides = [1, 1]} : vector<2x32xf32> to vector<2x8xf32>
    %203 = arith.mulf %200, %181 : vector<2x8xf32>
    %204 = arith.mulf %199, %201 : vector<2x8xf32>
    %205 = arith.addf %203, %204 : vector<2x8xf32>
    %206 = math.tanh %205 : vector<2x8xf32>
    %207 = arith.mulf %202, %206 : vector<2x8xf32>
    %208 = arith.index_cast %c7_i32 : i32 to index
    %c0_62 = arith.constant 0 : index
    %c0_63 = arith.constant 0 : index
    %209 = vector.load %arg5[%208, %c0_62, %c0_63] : memref<8x2x8xf32, #tpu.memory_space<vmem>>, vector<1x2x8xf32>
    %210 = vector.shape_cast %209 : vector<1x2x8xf32> to vector<2x8xf32>
    %211 = vector.shape_cast %207 : vector<2x8xf32> to vector<1x2x8xf32>
    tpu.vector_store %arg5[%208, %c0_62, %c0_63], %211 {strides = array<i32>} : memref<8x2x8xf32, #tpu.memory_space<vmem>>, vector<1x2x8xf32>,
    %c8_i32 = arith.constant 8 : i32
    %c0_64 = arith.constant 0 : index
    %c0_65 = arith.constant 0 : index
    %c0_66 = arith.constant 0 : index
    %212 = vector.load %arg5[%c0_64, %c0_65, %c0_66] : memref<8x2x8xf32, #tpu.memory_space<vmem>>, vector<8x1x8xf32>
    %213 = vector.shape_cast %212 : vector<8x1x8xf32> to vector<8x8xf32>
    %c0_67 = arith.constant 0 : index
    %c1_68 = arith.constant 1 : index
    %c0_69 = arith.constant 0 : index
    %214 = vector.load %arg5[%c0_67, %c1_68, %c0_69] : memref<8x2x8xf32, #tpu.memory_space<vmem>>, vector<8x1x8xf32>
    %215 = vector.shape_cast %214 : vector<8x1x8xf32> to vector<8x8xf32>
    %216 = tpu.concatenate %213, %215 in 0 : vector<8x8xf32>, vector<8x8xf32> -> vector<16x8xf32>
    %c0_70 = arith.constant 0 : index
    %c0_71 = arith.constant 0 : index
    %217 = vector.load %arg2[%c0_70, %c0_71] : memref<24x8xf32, #tpu.memory_space<vmem>>, vector<8x5xf32>
    %c8 = arith.constant 8 : index
    %c0_72 = arith.constant 0 : index
    %218 = vector.load %arg2[%c8, %c0_72] : memref<24x8xf32, #tpu.memory_space<vmem>>, vector<5x5xf32>
    %c16 = arith.constant 16 : index
    %c0_73 = arith.constant 0 : index
    %219 = vector.load %arg2[%c16, %c0_73] : memref<24x8xf32, #tpu.memory_space<vmem>>, vector<5x1xf32>
    %c13 = arith.constant 13 : index
    %c0_74 = arith.constant 0 : index
    %220 = vector.load %arg2[%c13, %c0_74] : memref<24x8xf32, #tpu.memory_space<vmem>>, vector<1x5xf32>
    %c14 = arith.constant 14 : index
    %c0_75 = arith.constant 0 : index
    %221 = vector.load %arg2[%c14, %c0_75] : memref<24x8xf32, #tpu.memory_space<vmem>>, vector<1x5xf32>
    %c15 = arith.constant 15 : index
    %c0_76 = arith.constant 0 : index
    %222 = vector.load %arg2[%c15, %c0_76] : memref<24x8xf32, #tpu.memory_space<vmem>>, vector<1x1xf32>
    %cst_77 = arith.constant 0.000000e+00 : f32
    %223 = vector.broadcast %cst_77 : f32 to vector<16x8xf32>
    %224 = arith.maximumf %216, %223 : vector<16x8xf32>
    %cst_78 = arith.constant dense<0.000000e+00> : vector<16x5xf32>
    %225 = tpu.matmul %224, %217, %cst_78 {dimension_numbers = #tpu.dot_dimension_numbers<[1], [0], [0], [1], [0, 0, 1, 1], [], []>} : vector<16x8xf32>, vector<8x5xf32>, vector<16x5xf32> -> vector<16x5xf32>
    %226 = vector.broadcast %220 : vector<1x5xf32> to vector<16x5xf32>
    %227 = arith.addf %225, %226 : vector<16x5xf32>
    %cst_79 = arith.constant 0.000000e+00 : f32
    %228 = vector.broadcast %cst_79 : f32 to vector<16x5xf32>
    %229 = arith.maximumf %227, %228 : vector<16x5xf32>
    %cst_80 = arith.constant dense<0.000000e+00> : vector<16x5xf32>
    %230 = tpu.matmul %229, %218, %cst_80 {dimension_numbers = #tpu.dot_dimension_numbers<[1], [0], [0], [1], [0, 0, 1, 1], [], []>} : vector<16x5xf32>, vector<5x5xf32>, vector<16x5xf32> -> vector<16x5xf32>
    %231 = vector.broadcast %221 : vector<1x5xf32> to vector<16x5xf32>
    %232 = arith.addf %230, %231 : vector<16x5xf32>
    %cst_81 = arith.constant 0.000000e+00 : f32
    %233 = vector.broadcast %cst_81 : f32 to vector<16x5xf32>
    %234 = arith.maximumf %232, %233 : vector<16x5xf32>
    %cst_82 = arith.constant dense<0.000000e+00> : vector<16x1xf32>
    %235 = tpu.matmul %234, %219, %cst_82 {dimension_numbers = #tpu.dot_dimension_numbers<[1], [0], [0], [1], [0, 0, 1, 1], [], []>} : vector<16x5xf32>, vector<5x1xf32>, vector<16x1xf32> -> vector<16x1xf32>
    %236 = vector.broadcast %222 : vector<1x1xf32> to vector<16x1xf32>
    %237 = arith.addf %235, %236 : vector<16x1xf32>
    %c0_83 = arith.constant 0 : index
    %c0_84 = arith.constant 0 : index
    %238 = vector.load %arg3[%c0_83, %c0_84] : memref<16x1xf32, #tpu.memory_space<vmem>>, vector<16x1xf32>
    tpu.vector_store %arg3[%c0_83, %c0_84], %237 {strides = array<i32>} : memref<16x1xf32, #tpu.memory_space<vmem>>, vector<16x1xf32>,
    return
  }
}

</mosaic_0001>

<llo_original>
// kernel: tpu_custom_call.1
$region0: #{tpu_custom_call.1}
  #allocation0 [shape = 'u32[]', space=smem, size = 0x4, offset = 0x4, fixed_abs, tag = 'smem constant byte address 0x4 - core index']
  #allocation1 [shape = 'u32[144,128]{1,0:T(1,128)}', space=vmem, size = 0x12000, scoped, tag = 'internal scratch']
  #allocation2 [shape = 'f32[8,2,32]{2,1,0:T(2,128)}', space=vmem, size = 0x2000, scoped, tag = 'scratch operand']
  #allocation3 [shape = 'f32[8,2,8]{2,1,0:T(2,128)}', space=vmem, size = 0x2000, scoped, tag = 'scratch operand']
  %s0 = inlined_call_operand.vmem [shape: f32[2,8,4], index: 0, kind: input, shape index: {}]
  %s1 = inlined_call_operand.vmem [shape: f32[13,32], index: 1, kind: input, shape index: {}]
  %s2 = inlined_call_operand.vmem [shape: f32[24,8], index: 2, kind: input, shape index: {}]
  %s3 = inlined_call_operand.vmem [shape: f32[16,1], index: 3, kind: output, shape index: {}]
  %s4 = sld [smem:[#allocation0]]
  $region22: #{tpu_custom_call.1} parent=0
    _
  %s6 = ssub.s32 1, %s4
  %s7 = scalar_select 0, %s6, %s4
  // Predicated region
  $region2: #{tpu_custom_call.1} parent=0 // pred_check
    _
  $region3: #{tpu_custom_call.1} parent=0 // pred_check_branch
    %9 = sbr.rel (0) target = $region5
  $region4: #{tpu_custom_call.1} parent=0 // pred_region
    _
  $region5: #{tpu_custom_call.1} parent=0 // pred_fallthru
    _
  // Predicated region
  $region6: #{tpu_custom_call.1} parent=0 // pred_check
    _
  $region7: #{tpu_custom_call.1} parent=0 // pred_check_branch
    %11 = sbr.rel (0) target = $region9
  $region8: #{tpu_custom_call.1} parent=0 // pred_region
    _
  $region9: #{tpu_custom_call.1} parent=0 // pred_fallthru
    _
  // Predicated region
  $region10: #{tpu_custom_call.1} parent=0 // pred_check
    _
  $region11: #{tpu_custom_call.1} parent=0 // pred_check_branch
    %13 = sbr.rel (0) target = $region13
  $region12: #{tpu_custom_call.1} parent=0 // pred_region
    _
  $region13: #{tpu_custom_call.1} parent=0 // pred_fallthru
    _
  %v14 = vld [vmem:[%s1] sm:$0xf]
  %v15 = vld [vmem:[%s1 + $0x4] sm:$0xff]
  %v16 = vld [vmem:[%s1 + $0xc] sm:$0x1]
  %v17 = vld [vmem:[%s0] sm:$0xff]
  %v18 = vlaneseq
  %v19 = vshrl.u32 %v18, 7
  %v20 = vsub.s32 0, %v19
  %v21 = vrot.slane %v16, %v20
  %vm22 = vcmask 31744
  %v24 = vsel %vm22, %v17, 0
  %vm26 = vcmask 1043456
  %v28 = vsel %vm26, %v14, 0
  %30 = vmatprep.subr.mxu0 0.0
  %31 = vmatpush1.msra.mxu0 0.0
  %32 = vmatprep.subr.mxu0 0.0
  %33 = vmatpush1.msra.mxu0 0.0
  %34 = vmatprep.subr.mxu0 0.0
  %35 = vmatpush1.msra.mxu0 0.0
  %36 = vmatprep.subr.mxu0 0.0
  %37 = vmatpush1.msra.mxu0 0.0
  %38 = vmatprep.subr.mxu0 0.0
  %39 = vmatpush1.msra.mxu0 0.0
  %40 = vmatprep.subr.mxu0 0.0
  %41 = vmatpush1.msra.mxu0 0.0
  %42 = vmatprep.subr.mxu0 0.0
  %43 = vmatpush1.msra.mxu0 0.0
  %44 = vmatprep.subr.mxu0 0.0
  %45 = vmatpush1.msra.mxu0 0.0
  %46 = vmatprep.subr.mxu0 0.0
  %47 = vmatpush1.msra.mxu0 0.0
  %48 = vmatprep.subr.mxu0 0.0
  %49 = vmatpush1.msra.mxu0 0.0
  %50 = vmatprep.subr.mxu0 0.0
  %51 = vmatpush1.msra.mxu0 0.0
  %52 = vmatprep.subr.mxu0 0.0
  %53 = vmatpush1.msra.mxu0 0.0
  %54 = vmatprep.subr.mxu0 0.0
  %55 = vmatpush1.msra.mxu0 0.0
  %56 = vmatprep.subr.mxu0 0.0
  %57 = vmatpush1.msra.mxu0 0.0
  %58 = vmatprep.subr.mxu0 0.0
  %59 = vmatpush1.msra.mxu0 0.0
  %60 = vmatprep.subr.mxu0 0.0
  %61 = vmatpush1.msra.mxu0 %v28
  %62 = vmatprep.subr.mxu0 0.0
  %63 = vmatpush2.msra.mxu0 0.0
  %64 = vmatprep.subr.mxu0 0.0
  %65 = vmatpush2.msra.mxu0 0.0
  %66 = vmatprep.subr.mxu0 0.0
  %67 = vmatpush2.msra.mxu0 0.0
  %68 = vmatprep.subr.mxu0 0.0
  %69 = vmatpush2.msra.mxu0 0.0
  %70 = vmatprep.subr.mxu0 0.0
  %71 = vmatpush2.msra.mxu0 0.0
  %72 = vmatprep.subr.mxu0 0.0
  %73 = vmatpush2.msra.mxu0 0.0
  %74 = vmatprep.subr.mxu0 0.0
  %75 = vmatpush2.msra.mxu0 0.0
  %76 = vmatprep.subr.mxu0 0.0
  %77 = vmatpush2.msra.mxu0 0.0
  %78 = vmatprep.subr.mxu0 0.0
  %79 = vmatpush2.msra.mxu0 0.0
  %80 = vmatprep.subr.mxu0 0.0
  %81 = vmatpush2.msra.mxu0 0.0
  %82 = vmatprep.subr.mxu0 0.0
  %83 = vmatpush2.msra.mxu0 0.0
  %84 = vmatprep.subr.mxu0 0.0
  %85 = vmatpush2.msra.mxu0 0.0
  %86 = vmatprep.subr.mxu0 0.0
  %87 = vmatpush2.msra.mxu0 0.0
  %88 = vmatprep.subr.mxu0 0.0
  %89 = vmatpush2.msra.mxu0 0.0
  %90 = vmatprep.subr.mxu0 0.0
  %91 = vmatpush2.msra.mxu0 0.0
  %92 = vmatprep.subr.mxu0 0.0
  %93 = vmatpush2.msra.mxu0 0.0
  %94 = vmatprep.mubr.f32.mxu0 0.0
  %95 = vmatmul.mubr.f32.gmra.mxu0 %v24
  %v96 = vpop.f32.mrf.mxu0
  %v97 = vadd.f32 %v21, %v96
  %v98 = vpop.f32.mrf.mxu0
  %99 = vdwg.mxu0
  %v101 = vcombine.high %v97, %v97
  %v103 = vunpack.c.l.s4 1966171168
  %v104 = vunpack.c.0.s8 %v103
  %v105 = vlaneseq
  %v106 = vshrl.u32 %v105, 7
  %v107 = vsub.s32 %v104, %v106
  %v108 = vrot.slane %v97, %v107
  %v110 = vunpack.c.l.s4 1966171168
  %v111 = vunpack.c.0.s8 %v110
  %v112 = vlaneseq
  %v113 = vshrl.u32 %v112, 7
  %v114 = vsub.s32 %v111, %v113
  %v115 = vrot.slane %v101, %v114
  %v116 = vcombine.high %v108, %v108
  %v117 = vcombine.high %v115, %v115
  %v119 = vunpack.c.l.s4 1966171168
  %v120 = vunpack.c.0.s8 %v119
  %v121 = vlaneseq
  %v122 = vshrl.u32 %v121, 7
  %v123 = vsub.s32 %v120, %v122
  %v124 = vrot.slane %v108, %v123
  %v126 = vunpack.c.l.s4 1966171168
  %v127 = vunpack.c.0.s8 %v126
  %v128 = vlaneseq
  %v129 = vshrl.u32 %v128, 7
  %v130 = vsub.s32 %v127, %v129
  %v131 = vrot.slane %v115, %v130
  %v133 = vunpack.c.l.s4 1966171168
  %v134 = vunpack.c.0.s8 %v133
  %v135 = vlaneseq
  %v136 = vshrl.u32 %v135, 7
  %v137 = vsub.s32 %v134, %v136
  %v138 = vrot.slane %v116, %v137
  %v140 = vunpack.c.l.s4 1966171168
  %v141 = vunpack.c.0.s8 %v140
  %v142 = vlaneseq
  %v143 = vshrl.u32 %v142, 7
  %v144 = vsub.s32 %v141, %v143
  %v145 = vrot.slane %v117, %v144
  %v146 = vcombine.high %v124, %v124
  %v147 = vcombine.high %v131, %v131
  %v148 = vcombine.high %v138, %v138
  %v149 = vcombine.high %v145, %v145
  %vm158 = vcmask 253952
  %159 = vst.msk [vmem:[#allocation2] sm:$0x1] %vm158, %v124
  %160 = vst.msk [vmem:[#allocation2 + $0x2] sm:$0x1] %vm158, %v138
  %161 = vst.msk [vmem:[#allocation2 + $0x4] sm:$0x1] %vm158, %v146
  %162 = vst.msk [vmem:[#allocation2 + $0x6] sm:$0x1] %vm158, %v148
  %163 = vst.msk [vmem:[#allocation2 + $0x8] sm:$0x1] %vm158, %v131
  %164 = vst.msk [vmem:[#allocation2 + $0xa] sm:$0x1] %vm158, %v145
  %165 = vst.msk [vmem:[#allocation2 + $0xc] sm:$0x1] %vm158, %v147
  %166 = vst.msk [vmem:[#allocation2 + $0xe] sm:$0x1] %vm158, %v149
  %s167 = scalar_lea.vmem %s0, 8
  %v168 = vld [vmem:[%s167] sm:$0xff]
  %v170 = vsel %vm22, %v168, 0
  %172 = vmatprep.subr.mxu0 0.0
  %173 = vmatpush1.msra.mxu0 0.0
  %174 = vmatprep.subr.mxu0 0.0
  %175 = vmatpush1.msra.mxu0 0.0
  %176 = vmatprep.subr.mxu0 0.0
  %177 = vmatpush1.msra.mxu0 0.0
  %178 = vmatprep.subr.mxu0 0.0
  %179 = vmatpush1.msra.mxu0 0.0
  %180 = vmatprep.subr.mxu0 0.0
  %181 = vmatpush1.msra.mxu0 0.0
  %182 = vmatprep.subr.mxu0 0.0
  %183 = vmatpush1.msra.mxu0 0.0
  %184 = vmatprep.subr.mxu0 0.0
  %185 = vmatpush1.msra.mxu0 0.0
  %186 = vmatprep.subr.mxu0 0.0
  %187 = vmatpush1.msra.mxu0 0.0
  %188 = vmatprep.subr.mxu0 0.0
  %189 = vmatpush1.msra.mxu0 0.0
  %190 = vmatprep.subr.mxu0 0.0
  %191 = vmatpush1.msra.mxu0 0.0
  %192 = vmatprep.subr.mxu0 0.0
  %193 = vmatpush1.msra.mxu0 0.0
  %194 = vmatprep.subr.mxu0 0.0
  %195 = vmatpush1.msra.mxu0 0.0
  %196 = vmatprep.subr.mxu0 0.0
  %197 = vmatpush1.msra.mxu0 0.0
  %198 = vmatprep.subr.mxu0 0.0
  %199 = vmatpush1.msra.mxu0 0.0
  %200 = vmatprep.subr.mxu0 0.0
  %201 = vmatpush1.msra.mxu0 0.0
  %202 = vmatprep.subr.mxu0 0.0
  %203 = vmatpush1.msra.mxu0 %v28
  %204 = vmatprep.subr.mxu0 0.0
  %205 = vmatpush2.msra.mxu0 0.0
  %206 = vmatprep.subr.mxu0 0.0
  %207 = vmatpush2.msra.mxu0 0.0
  %208 = vmatprep.subr.mxu0 0.0
  %209 = vmatpush2.msra.mxu0 0.0
  %210 = vmatprep.subr.mxu0 0.0
  %211 = vmatpush2.msra.mxu0 0.0
  %212 = vmatprep.subr.mxu0 0.0
  %213 = vmatpush2.msra.mxu0 0.0
  %214 = vmatprep.subr.mxu0 0.0
  %215 = vmatpush2.msra.mxu0 0.0
  %216 = vmatprep.subr.mxu0 0.0
  %217 = vmatpush2.msra.mxu0 0.0
  %218 = vmatprep.subr.mxu0 0.0
  %219 = vmatpush2.msra.mxu0 0.0
  %220 = vmatprep.subr.mxu0 0.0
  %221 = vmatpush2.msra.mxu0 0.0
  %222 = vmatprep.subr.mxu0 0.0
  %223 = vmatpush2.msra.mxu0 0.0
  %224 = vmatprep.subr.mxu0 0.0
  %225 = vmatpush2.msra.mxu0 0.0
  %226 = vmatprep.subr.mxu0 0.0
  %227 = vmatpush2.msra.mxu0 0.0
  %228 = vmatprep.subr.mxu0 0.0
  %229 = vmatpush2.msra.mxu0 0.0
  %230 = vmatprep.subr.mxu0 0.0
  %231 = vmatpush2.msra.mxu0 0.0
  %232 = vmatprep.subr.mxu0 0.0
  %233 = vmatpush2.msra.mxu0 0.0
  %234 = vmatprep.subr.mxu0 0.0
  %235 = vmatpush2.msra.mxu0 0.0
  %236 = vmatprep.mubr.f32.mxu0 0.0
  %237 = vmatmul.mubr.f32.gmra.mxu0 %v170
  %v238 = vpop.f32.mrf.mxu0
  %v239 = vadd.f32 %v21, %v238
  %v240 = vpop.f32.mrf.mxu0
  %241 = vdwg.mxu0
  %v243 = vcombine.high %v239, %v239
  %v245 = vunpack.c.l.s4 1966171168
  %v246 = vunpack.c.0.s8 %v245
  %v247 = vlaneseq
  %v248 = vshrl.u32 %v247, 7
  %v249 = vsub.s32 %v246, %v248
  %v250 = vrot.slane %v239, %v249
  %v252 = vunpack.c.l.s4 1966171168
  %v253 = vunpack.c.0.s8 %v252
  %v254 = vlaneseq
  %v255 = vshrl.u32 %v254, 7
  %v256 = vsub.s32 %v253, %v255
  %v257 = vrot.slane %v243, %v256
  %v258 = vcombine.high %v250, %v250
  %v259 = vcombine.high %v257, %v257
  %v261 = vunpack.c.l.s4 1966171168
  %v262 = vunpack.c.0.s8 %v261
  %v263 = vlaneseq
  %v264 = vshrl.u32 %v263, 7
  %v265 = vsub.s32 %v262, %v264
  %v266 = vrot.slane %v250, %v265
  %v268 = vunpack.c.l.s4 1966171168
  %v269 = vunpack.c.0.s8 %v268
  %v270 = vlaneseq
  %v271 = vshrl.u32 %v270, 7
  %v272 = vsub.s32 %v269, %v271
  %v273 = vrot.slane %v257, %v272
  %v275 = vunpack.c.l.s4 1966171168
  %v276 = vunpack.c.0.s8 %v275
  %v277 = vlaneseq
  %v278 = vshrl.u32 %v277, 7
  %v279 = vsub.s32 %v276, %v278
  %v280 = vrot.slane %v258, %v279
  %v282 = vunpack.c.l.s4 1966171168
  %v283 = vunpack.c.0.s8 %v282
  %v284 = vlaneseq
  %v285 = vshrl.u32 %v284, 7
  %v286 = vsub.s32 %v283, %v285
  %v287 = vrot.slane %v259, %v286
  %v288 = vcombine.high %v266, %v266
  %v289 = vcombine.high %v273, %v273
  %v290 = vcombine.high %v280, %v280
  %v291 = vcombine.high %v287, %v287
  %300 = vst.msk [vmem:[#allocation2 + $0x1] sm:$0x1] %vm158, %v266
  %301 = vst.msk [vmem:[#allocation2 + $0x3] sm:$0x1] %vm158, %v280
  %302 = vst.msk [vmem:[#allocation2 + $0x5] sm:$0x1] %vm158, %v288
  %303 = vst.msk [vmem:[#allocation2 + $0x7] sm:$0x1] %vm158, %v290
  %304 = vst.msk [vmem:[#allocation2 + $0x9] sm:$0x1] %vm158, %v273
  %305 = vst.msk [vmem:[#allocation2 + $0xb] sm:$0x1] %vm158, %v287
  %306 = vst.msk [vmem:[#allocation2 + $0xd] sm:$0x1] %vm158, %v289
  %307 = vst.msk [vmem:[#allocation2 + $0xf] sm:$0x1] %vm158, %v291
  %v308 = vld [vmem:[#allocation2] sm:$0x3]
  %vm309 = vcmask 64512
  %v311 = vsel %vm309, 0.0, 0
  %313 = vmatprep.subr.mxu0 0.0
  %314 = vmatpush1.msra.mxu0 0.0
  %315 = vmatprep.subr.mxu0 0.0
  %316 = vmatpush1.msra.mxu0 0.0
  %317 = vmatprep.subr.mxu0 0.0
  %318 = vmatpush1.msra.mxu0 0.0
  %319 = vmatprep.subr.mxu0 0.0
  %320 = vmatpush1.msra.mxu0 0.0
  %321 = vmatprep.subr.mxu0 0.0
  %322 = vmatpush1.msra.mxu0 0.0
  %323 = vmatprep.subr.mxu0 0.0
  %324 = vmatpush1.msra.mxu0 0.0
  %325 = vmatprep.subr.mxu0 0.0
  %326 = vmatpush1.msra.mxu0 0.0
  %327 = vmatprep.subr.mxu0 0.0
  %328 = vmatpush1.msra.mxu0 0.0
  %329 = vmatprep.subr.mxu0 0.0
  %330 = vmatpush1.msra.mxu0 0.0
  %331 = vmatprep.subr.mxu0 0.0
  %332 = vmatpush1.msra.mxu0 0.0
  %333 = vmatprep.subr.mxu0 0.0
  %334 = vmatpush1.msra.mxu0 0.0
  %335 = vmatprep.subr.mxu0 0.0
  %336 = vmatpush1.msra.mxu0 0.0
  %337 = vmatprep.subr.mxu0 0.0
  %338 = vmatpush1.msra.mxu0 0.0
  %339 = vmatprep.subr.mxu0 0.0
  %340 = vmatpush1.msra.mxu0 0.0
  %341 = vmatprep.subr.mxu0 0.0
  %342 = vmatpush1.msra.mxu0 0.0
  %343 = vmatprep.subr.mxu0 0.0
  %344 = vmatpush1.msra.mxu0 %v15
  %345 = vmatprep.subr.mxu0 0.0
  %346 = vmatpush2.msra.mxu0 0.0
  %347 = vmatprep.subr.mxu0 0.0
  %348 = vmatpush2.msra.mxu0 0.0
  %349 = vmatprep.subr.mxu0 0.0
  %350 = vmatpush2.msra.mxu0 0.0
  %351 = vmatprep.subr.mxu0 0.0
  %352 = vmatpush2.msra.mxu0 0.0
  %353 = vmatprep.subr.mxu0 0.0
  %354 = vmatpush2.msra.mxu0 0.0
  %355 = vmatprep.subr.mxu0 0.0
  %356 = vmatpush2.msra.mxu0 0.0
  %357 = vmatprep.subr.mxu0 0.0
  %358 = vmatpush2.msra.mxu0 0.0
  %359 = vmatprep.subr.mxu0 0.0
  %360 = vmatpush2.msra.mxu0 0.0
  %361 = vmatprep.subr.mxu0 0.0
  %362 = vmatpush2.msra.mxu0 0.0
  %363 = vmatprep.subr.mxu0 0.0
  %364 = vmatpush2.msra.mxu0 0.0
  %365 = vmatprep.subr.mxu0 0.0
  %366 = vmatpush2.msra.mxu0 0.0
  %367 = vmatprep.subr.mxu0 0.0
  %368 = vmatpush2.msra.mxu0 0.0
  %369 = vmatprep.subr.mxu0 0.0
  %370 = vmatpush2.msra.mxu0 0.0
  %371 = vmatprep.subr.mxu0 0.0
  %372 = vmatpush2.msra.mxu0 0.0
  %373 = vmatprep.subr.mxu0 0.0
  %374 = vmatpush2.msra.mxu0 0.0
  %375 = vmatprep.subr.mxu0 0.0
  %376 = vmatpush2.msra.mxu0 0.0
  %377 = vmatprep.mubr.f32.mxu0 0.0
  %378 = vmatmul.mubr.f32.gmra.mxu0 %v311
  %v379 = vpop.f32.mrf.mxu0
  %v380 = vadd.f32 0.0, %v379
  %v381 = vpop.f32.mrf.mxu0
  %382 = vdwg.mxu0
  %v383 = vadd.f32 %v308, %v380
  %v384 = vxor.u32 %v383, 2147483648
  %v385 = vmul.f32 %v384, 1.442695
  %v386 = vpow.pop %v385
  %v387 = vadd.f32 %v386, 1.0
  %v388 = vrcp.pop %v387
  %v389 = vmul.f32 1.0, %v388
  %v390 = vtanh.pop %v383
  %v391 = vmul.f32 %v389, 0.0
  %393 = vrot.lane.b32.xlu0 %v390, 112
  %v394 = vpop.permute.xlu0 %393
  %v396 = vmul.f32 %v389, %v394
  %398 = vrot.lane.b32.xlu0 %v396, 8
  %v399 = vpop.permute.xlu0 %398
  %v401 = vadd.f32 %v391, %v399
  %v402 = vtanh.pop %v401
  %404 = vrot.lane.b32.xlu0 %v402, 16
  %v405 = vpop.permute.xlu0 %404
  %v407 = vmul.f32 %v389, %v405
  %409 = vrot.lane.b32.xlu0 %v407, 104
  %v410 = vpop.permute.xlu0 %409
  %vm412 = vcmask 58368
  %413 = vst.msk [vmem:[#allocation3] sm:$0x3] %vm412, %v410
  %s414 = scalar_lea.vmem [#allocation2], 2
  %v415 = vld [vmem:[%s414] sm:$0x3]
  %v416 = vsel %vm309, %v410, 0
  %418 = vmatprep.subr.mxu0 0.0
  %419 = vmatpush1.msra.mxu0 0.0
  %420 = vmatprep.subr.mxu0 0.0
  %421 = vmatpush1.msra.mxu0 0.0
  %422 = vmatprep.subr.mxu0 0.0
  %423 = vmatpush1.msra.mxu0 0.0
  %424 = vmatprep.subr.mxu0 0.0
  %425 = vmatpush1.msra.mxu0 0.0
  %426 = vmatprep.subr.mxu0 0.0
  %427 = vmatpush1.msra.mxu0 0.0
  %428 = vmatprep.subr.mxu0 0.0
  %429 = vmatpush1.msra.mxu0 0.0
  %430 = vmatprep.subr.mxu0 0.0
  %431 = vmatpush1.msra.mxu0 0.0
  %432 = vmatprep.subr.mxu0 0.0
  %433 = vmatpush1.msra.mxu0 0.0
  %434 = vmatprep.subr.mxu0 0.0
  %435 = vmatpush1.msra.mxu0 0.0
  %436 = vmatprep.subr.mxu0 0.0
  %437 = vmatpush1.msra.mxu0 0.0
  %438 = vmatprep.subr.mxu0 0.0
  %439 = vmatpush1.msra.mxu0 0.0
  %440 = vmatprep.subr.mxu0 0.0
  %441 = vmatpush1.msra.mxu0 0.0
  %442 = vmatprep.subr.mxu0 0.0
  %443 = vmatpush1.msra.mxu0 0.0
  %444 = vmatprep.subr.mxu0 0.0
  %445 = vmatpush1.msra.mxu0 0.0
  %446 = vmatprep.subr.mxu0 0.0
  %447 = vmatpush1.msra.mxu0 0.0
  %448 = vmatprep.subr.mxu0 0.0
  %449 = vmatpush1.msra.mxu0 %v15
  %450 = vmatprep.subr.mxu0 0.0
  %451 = vmatpush2.msra.mxu0 0.0
  %452 = vmatprep.subr.mxu0 0.0
  %453 = vmatpush2.msra.mxu0 0.0
  %454 = vmatprep.subr.mxu0 0.0
  %455 = vmatpush2.msra.mxu0 0.0
  %456 = vmatprep.subr.mxu0 0.0
  %457 = vmatpush2.msra.mxu0 0.0
  %458 = vmatprep.subr.mxu0 0.0
  %459 = vmatpush2.msra.mxu0 0.0
  %460 = vmatprep.subr.mxu0 0.0
  %461 = vmatpush2.msra.mxu0 0.0
  %462 = vmatprep.subr.mxu0 0.0
  %463 = vmatpush2.msra.mxu0 0.0
  %464 = vmatprep.subr.mxu0 0.0
  %465 = vmatpush2.msra.mxu0 0.0
  %466 = vmatprep.subr.mxu0 0.0
  %467 = vmatpush2.msra.mxu0 0.0
  %468 = vmatprep.subr.mxu0 0.0
  %469 = vmatpush2.msra.mxu0 0.0
  %470 = vmatprep.subr.mxu0 0.0
  %471 = vmatpush2.msra.mxu0 0.0
  %472 = vmatprep.subr.mxu0 0.0
  %473 = vmatpush2.msra.mxu0 0.0
  %474 = vmatprep.subr.mxu0 0.0
  %475 = vmatpush2.msra.mxu0 0.0
  %476 = vmatprep.subr.mxu0 0.0
  %477 = vmatpush2.msra.mxu0 0.0
  %478 = vmatprep.subr.mxu0 0.0
  %479 = vmatpush2.msra.mxu0 0.0
  %480 = vmatprep.subr.mxu0 0.0
  %481 = vmatpush2.msra.mxu0 0.0
  %482 = vmatprep.mubr.f32.mxu0 0.0
  %483 = vmatmul.mubr.f32.gmra.mxu0 %v416
  %v484 = vpop.f32.mrf.mxu0
  %v485 = vadd.f32 0.0, %v484
  %v486 = vpop.f32.mrf.mxu0
  %487 = vdwg.mxu0
  %v488 = vadd.f32 %v415, %v485
  %v489 = vxor.u32 %v488, 2147483648
  %v490 = vmul.f32 %v489, 1.442695
  %v491 = vpow.pop %v490
  %v492 = vadd.f32 %v491, 1.0
  %v493 = vrcp.pop %v492
  %v494 = vmul.f32 1.0, %v493
  %v495 = vtanh.pop %v488
  %v496 = vmul.f32 %v494, %v401
  %498 = vrot.lane.b32.xlu0 %v495, 112
  %v499 = vpop.permute.xlu0 %498
  %v501 = vmul.f32 %v494, %v499
  %503 = vrot.lane.b32.xlu0 %v501, 8
  %v504 = vpop.permute.xlu0 %503
  %v506 = vadd.f32 %v496, %v504
  %v507 = vtanh.pop %v506
  %509 = vrot.lane.b32.xlu0 %v507, 16
  %v510 = vpop.permute.xlu0 %509
  %v512 = vmul.f32 %v494, %v510
  %514 = vrot.lane.b32.xlu0 %v512, 104
  %v515 = vpop.permute.xlu0 %514
  %s517 = scalar_lea.vmem [#allocation3], 2
  %518 = vst.msk [vmem:[%s517] sm:$0x3] %vm412, %v515
  %s519 = scalar_lea.vmem [#allocation2], 4
  %v520 = vld [vmem:[%s519] sm:$0x3]
  %v521 = vsel %vm309, %v515, 0
  %523 = vmatprep.subr.mxu0 0.0
  %524 = vmatpush1.msra.mxu0 0.0
  %525 = vmatprep.subr.mxu0 0.0
  %526 = vmatpush1.msra.mxu0 0.0
  %527 = vmatprep.subr.mxu0 0.0
  %528 = vmatpush1.msra.mxu0 0.0
  %529 = vmatprep.subr.mxu0 0.0
  %530 = vmatpush1.msra.mxu0 0.0
  %531 = vmatprep.subr.mxu0 0.0
  %532 = vmatpush1.msra.mxu0 0.0
  %533 = vmatprep.subr.mxu0 0.0
  %534 = vmatpush1.msra.mxu0 0.0
  %535 = vmatprep.subr.mxu0 0.0
  %536 = vmatpush1.msra.mxu0 0.0
  %537 = vmatprep.subr.mxu0 0.0
  %538 = vmatpush1.msra.mxu0 0.0
  %539 = vmatprep.subr.mxu0 0.0
  %540 = vmatpush1.msra.mxu0 0.0
  %541 = vmatprep.subr.mxu0 0.0
  %542 = vmatpush1.msra.mxu0 0.0
  %543 = vmatprep.subr.mxu0 0.0
  %544 = vmatpush1.msra.mxu0 0.0
  %545 = vmatprep.subr.mxu0 0.0
  %546 = vmatpush1.msra.mxu0 0.0
  %547 = vmatprep.subr.mxu0 0.0
  %548 = vmatpush1.msra.mxu0 0.0
  %549 = vmatprep.subr.mxu0 0.0
  %550 = vmatpush1.msra.mxu0 0.0
  %551 = vmatprep.subr.mxu0 0.0
  %552 = vmatpush1.msra.mxu0 0.0
  %553 = vmatprep.subr.mxu0 0.0
  %554 = vmatpush1.msra.mxu0 %v15
  %555 = vmatprep.subr.mxu0 0.0
  %556 = vmatpush2.msra.mxu0 0.0
  %557 = vmatprep.subr.mxu0 0.0
  %558 = vmatpush2.msra.mxu0 0.0
  %559 = vmatprep.subr.mxu0 0.0
  %560 = vmatpush2.msra.mxu0 0.0
  %561 = vmatprep.subr.mxu0 0.0
  %562 = vmatpush2.msra.mxu0 0.0
  %563 = vmatprep.subr.mxu0 0.0
  %564 = vmatpush2.msra.mxu0 0.0
  %565 = vmatprep.subr.mxu0 0.0
  %566 = vmatpush2.msra.mxu0 0.0
  %567 = vmatprep.subr.mxu0 0.0
  %568 = vmatpush2.msra.mxu0 0.0
  %569 = vmatprep.subr.mxu0 0.0
  %570 = vmatpush2.msra.mxu0 0.0
  %571 = vmatprep.subr.mxu0 0.0
  %572 = vmatpush2.msra.mxu0 0.0
  %573 = vmatprep.subr.mxu0 0.0
  %574 = vmatpush2.msra.mxu0 0.0
  %575 = vmatprep.subr.mxu0 0.0
  %576 = vmatpush2.msra.mxu0 0.0
  %577 = vmatprep.subr.mxu0 0.0
  %578 = vmatpush2.msra.mxu0 0.0
  %579 = vmatprep.subr.mxu0 0.0
  %580 = vmatpush2.msra.mxu0 0.0
  %581 = vmatprep.subr.mxu0 0.0
  %582 = vmatpush2.msra.mxu0 0.0
  %583 = vmatprep.subr.mxu0 0.0
  %584 = vmatpush2.msra.mxu0 0.0
  %585 = vmatprep.subr.mxu0 0.0
  %586 = vmatpush2.msra.mxu0 0.0
  %587 = vmatprep.mubr.f32.mxu0 0.0
  %588 = vmatmul.mubr.f32.gmra.mxu0 %v521
  %v589 = vpop.f32.mrf.mxu0
  %v590 = vadd.f32 0.0, %v589
  %v591 = vpop.f32.mrf.mxu0
  %592 = vdwg.mxu0
  %v593 = vadd.f32 %v520, %v590
  %v594 = vxor.u32 %v593, 2147483648
  %v595 = vmul.f32 %v594, 1.442695
  %v596 = vpow.pop %v595
  %v597 = vadd.f32 %v596, 1.0
  %v598 = vrcp.pop %v597
  %v599 = vmul.f32 1.0, %v598
  %v600 = vtanh.pop %v593
  %v601 = vmul.f32 %v599, %v506
  %603 = vrot.lane.b32.xlu0 %v600, 112
  %v604 = vpop.permute.xlu0 %603
  %v606 = vmul.f32 %v599, %v604
  %608 = vrot.lane.b32.xlu0 %v606, 8
  %v609 = vpop.permute.xlu0 %608
  %v611 = vadd.f32 %v601, %v609
  %v612 = vtanh.pop %v611
  %614 = vrot.lane.b32.xlu0 %v612, 16
  %v615 = vpop.permute.xlu0 %614
  %v617 = vmul.f32 %v599, %v615
  %619 = vrot.lane.b32.xlu0 %v617, 104
  %v620 = vpop.permute.xlu0 %619
  %s622 = scalar_lea.vmem [#allocation3], 4
  %623 = vst.msk [vmem:[%s622] sm:$0x3] %vm412, %v620
  %s624 = scalar_lea.vmem [#allocation2], 6
  %v625 = vld [vmem:[%s624] sm:$0x3]
  %v626 = vsel %vm309, %v620, 0
  %628 = vmatprep.subr.mxu0 0.0
  %629 = vmatpush1.msra.mxu0 0.0
  %630 = vmatprep.subr.mxu0 0.0
  %631 = vmatpush1.msra.mxu0 0.0
  %632 = vmatprep.subr.mxu0 0.0
  %633 = vmatpush1.msra.mxu0 0.0
  %634 = vmatprep.subr.mxu0 0.0
  %635 = vmatpush1.msra.mxu0 0.0
  %636 = vmatprep.subr.mxu0 0.0
  %637 = vmatpush1.msra.mxu0 0.0
  %638 = vmatprep.subr.mxu0 0.0
  %639 = vmatpush1.msra.mxu0 0.0
  %640 = vmatprep.subr.mxu0 0.0
  %641 = vmatpush1.msra.mxu0 0.0
  %642 = vmatprep.subr.mxu0 0.0
  %643 = vmatpush1.msra.mxu0 0.0
  %644 = vmatprep.subr.mxu0 0.0
  %645 = vmatpush1.msra.mxu0 0.0
  %646 = vmatprep.subr.mxu0 0.0
  %647 = vmatpush1.msra.mxu0 0.0
  %648 = vmatprep.subr.mxu0 0.0
  %649 = vmatpush1.msra.mxu0 0.0
  %650 = vmatprep.subr.mxu0 0.0
  %651 = vmatpush1.msra.mxu0 0.0
  %652 = vmatprep.subr.mxu0 0.0
  %653 = vmatpush1.msra.mxu0 0.0
  %654 = vmatprep.subr.mxu0 0.0
  %655 = vmatpush1.msra.mxu0 0.0
  %656 = vmatprep.subr.mxu0 0.0
  %657 = vmatpush1.msra.mxu0 0.0
  %658 = vmatprep.subr.mxu0 0.0
  %659 = vmatpush1.msra.mxu0 %v15
  %660 = vmatprep.subr.mxu0 0.0
  %661 = vmatpush2.msra.mxu0 0.0
  %662 = vmatprep.subr.mxu0 0.0
  %663 = vmatpush2.msra.mxu0 0.0
  %664 = vmatprep.subr.mxu0 0.0
  %665 = vmatpush2.msra.mxu0 0.0
  %666 = vmatprep.subr.mxu0 0.0
  %667 = vmatpush2.msra.mxu0 0.0
  %668 = vmatprep.subr.mxu0 0.0
  %669 = vmatpush2.msra.mxu0 0.0
  %670 = vmatprep.subr.mxu0 0.0
  %671 = vmatpush2.msra.mxu0 0.0
  %672 = vmatprep.subr.mxu0 0.0
  %673 = vmatpush2.msra.mxu0 0.0
  %674 = vmatprep.subr.mxu0 0.0
  %675 = vmatpush2.msra.mxu0 0.0
  %676 = vmatprep.subr.mxu0 0.0
  %677 = vmatpush2.msra.mxu0 0.0
  %678 = vmatprep.subr.mxu0 0.0
  %679 = vmatpush2.msra.mxu0 0.0
  %680 = vmatprep.subr.mxu0 0.0
  %681 = vmatpush2.msra.mxu0 0.0
  %682 = vmatprep.subr.mxu0 0.0
  %683 = vmatpush2.msra.mxu0 0.0
  %684 = vmatprep.subr.mxu0 0.0
  %685 = vmatpush2.msra.mxu0 0.0
  %686 = vmatprep.subr.mxu0 0.0
  %687 = vmatpush2.msra.mxu0 0.0
  %688 = vmatprep.subr.mxu0 0.0
  %689 = vmatpush2.msra.mxu0 0.0
  %690 = vmatprep.subr.mxu0 0.0
  %691 = vmatpush2.msra.mxu0 0.0
  %692 = vmatprep.mubr.f32.mxu0 0.0
  %693 = vmatmul.mubr.f32.gmra.mxu0 %v626
  %v694 = vpop.f32.mrf.mxu0
  %v695 = vadd.f32 0.0, %v694
  %v696 = vpop.f32.mrf.mxu0
  %697 = vdwg.mxu0
  %v698 = vadd.f32 %v625, %v695
  %v699 = vxor.u32 %v698, 2147483648
  %v700 = vmul.f32 %v699, 1.442695
  %v701 = vpow.pop %v700
  %v702 = vadd.f32 %v701, 1.0
  %v703 = vrcp.pop %v702
  %v704 = vmul.f32 1.0, %v703
  %v705 = vtanh.pop %v698
  %v706 = vmul.f32 %v704, %v611
  %708 = vrot.lane.b32.xlu0 %v705, 112
  %v709 = vpop.permute.xlu0 %708
  %v711 = vmul.f32 %v704, %v709
  %713 = vrot.lane.b32.xlu0 %v711, 8
  %v714 = vpop.permute.xlu0 %713
  %v716 = vadd.f32 %v706, %v714
  %v717 = vtanh.pop %v716
  %719 = vrot.lane.b32.xlu0 %v717, 16
  %v720 = vpop.permute.xlu0 %719
  %v722 = vmul.f32 %v704, %v720
  %724 = vrot.lane.b32.xlu0 %v722, 104
  %v725 = vpop.permute.xlu0 %724
  %s727 = scalar_lea.vmem [#allocation3], 6
  %728 = vst.msk [vmem:[%s727] sm:$0x3] %vm412, %v725
  %s729 = scalar_lea.vmem [#allocation2], 8
  %v730 = vld [vmem:[%s729] sm:$0x3]
  %v731 = vsel %vm309, %v725, 0
  %733 = vmatprep.subr.mxu0 0.0
  %734 = vmatpush1.msra.mxu0 0.0
  %735 = vmatprep.subr.mxu0 0.0
  %736 = vmatpush1.msra.mxu0 0.0
  %737 = vmatprep.subr.mxu0 0.0
  %738 = vmatpush1.msra.mxu0 0.0
  %739 = vmatprep.subr.mxu0 0.0
  %740 = vmatpush1.msra.mxu0 0.0
  %741 = vmatprep.subr.mxu0 0.0
  %742 = vmatpush1.msra.mxu0 0.0
  %743 = vmatprep.subr.mxu0 0.0
  %744 = vmatpush1.msra.mxu0 0.0
  %745 = vmatprep.subr.mxu0 0.0
  %746 = vmatpush1.msra.mxu0 0.0
  %747 = vmatprep.subr.mxu0 0.0
  %748 = vmatpush1.msra.mxu0 0.0
  %749 = vmatprep.subr.mxu0 0.0
  %750 = vmatpush1.msra.mxu0 0.0
  %751 = vmatprep.subr.mxu0 0.0
  %752 = vmatpush1.msra.mxu0 0.0
  %753 = vmatprep.subr.mxu0 0.0
  %754 = vmatpush1.msra.mxu0 0.0
  %755 = vmatprep.subr.mxu0 0.0
  %756 = vmatpush1.msra.mxu0 0.0
  %757 = vmatprep.subr.mxu0 0.0
  %758 = vmatpush1.msra.mxu0 0.0
  %759 = vmatprep.subr.mxu0 0.0
  %760 = vmatpush1.msra.mxu0 0.0
  %761 = vmatprep.subr.mxu0 0.0
  %762 = vmatpush1.msra.mxu0 0.0
  %763 = vmatprep.subr.mxu0 0.0
  %764 = vmatpush1.msra.mxu0 %v15
  %765 = vmatprep.subr.mxu0 0.0
  %766 = vmatpush2.msra.mxu0 0.0
  %767 = vmatprep.subr.mxu0 0.0
  %768 = vmatpush2.msra.mxu0 0.0
  %769 = vmatprep.subr.mxu0 0.0
  %770 = vmatpush2.msra.mxu0 0.0
  %771 = vmatprep.subr.mxu0 0.0
  %772 = vmatpush2.msra.mxu0 0.0
  %773 = vmatprep.subr.mxu0 0.0
  %774 = vmatpush2.msra.mxu0 0.0
  %775 = vmatprep.subr.mxu0 0.0
  %776 = vmatpush2.msra.mxu0 0.0
  %777 = vmatprep.subr.mxu0 0.0
  %778 = vmatpush2.msra.mxu0 0.0
  %779 = vmatprep.subr.mxu0 0.0
  %780 = vmatpush2.msra.mxu0 0.0
  %781 = vmatprep.subr.mxu0 0.0
  %782 = vmatpush2.msra.mxu0 0.0
  %783 = vmatprep.subr.mxu0 0.0
  %784 = vmatpush2.msra.mxu0 0.0
  %785 = vmatprep.subr.mxu0 0.0
  %786 = vmatpush2.msra.mxu0 0.0
  %787 = vmatprep.subr.mxu0 0.0
  %788 = vmatpush2.msra.mxu0 0.0
  %789 = vmatprep.subr.mxu0 0.0
  %790 = vmatpush2.msra.mxu0 0.0
  %791 = vmatprep.subr.mxu0 0.0
  %792 = vmatpush2.msra.mxu0 0.0
  %793 = vmatprep.subr.mxu0 0.0
  %794 = vmatpush2.msra.mxu0 0.0
  %795 = vmatprep.subr.mxu0 0.0
  %796 = vmatpush2.msra.mxu0 0.0
  %797 = vmatprep.mubr.f32.mxu0 0.0
  %798 = vmatmul.mubr.f32.gmra.mxu0 %v731
  %v799 = vpop.f32.mrf.mxu0
  %v800 = vadd.f32 0.0, %v799
  %v801 = vpop.f32.mrf.mxu0
  %802 = vdwg.mxu0
  %v803 = vadd.f32 %v730, %v800
  %v804 = vxor.u32 %v803, 2147483648
  %v805 = vmul.f32 %v804, 1.442695
  %v806 = vpow.pop %v805
  %v807 = vadd.f32 %v806, 1.0
  %v808 = vrcp.pop %v807
  %v809 = vmul.f32 1.0, %v808
  %v810 = vtanh.pop %v803
  %v811 = vmul.f32 %v809, %v716
  %813 = vrot.lane.b32.xlu0 %v810, 112
  %v814 = vpop.permute.xlu0 %813
  %v816 = vmul.f32 %v809, %v814
  %818 = vrot.lane.b32.xlu0 %v816, 8
  %v819 = vpop.permute.xlu0 %818
  %v821 = vadd.f32 %v811, %v819
  %v822 = vtanh.pop %v821
  %824 = vrot.lane.b32.xlu0 %v822, 16
  %v825 = vpop.permute.xlu0 %824
  %v827 = vmul.f32 %v809, %v825
  %829 = vrot.lane.b32.xlu0 %v827, 104
  %v830 = vpop.permute.xlu0 %829
  %s832 = scalar_lea.vmem [#allocation3], 8
  %833 = vst.msk [vmem:[%s832] sm:$0x3] %vm412, %v830
  %s834 = scalar_lea.vmem [#allocation2], 10
  %v835 = vld [vmem:[%s834] sm:$0x3]
  %v836 = vsel %vm309, %v830, 0
  %838 = vmatprep.subr.mxu0 0.0
  %839 = vmatpush1.msra.mxu0 0.0
  %840 = vmatprep.subr.mxu0 0.0
  %841 = vmatpush1.msra.mxu0 0.0
  %842 = vmatprep.subr.mxu0 0.0
  %843 = vmatpush1.msra.mxu0 0.0
  %844 = vmatprep.subr.mxu0 0.0
  %845 = vmatpush1.msra.mxu0 0.0
  %846 = vmatprep.subr.mxu0 0.0
  %847 = vmatpush1.msra.mxu0 0.0
  %848 = vmatprep.subr.mxu0 0.0
  %849 = vmatpush1.msra.mxu0 0.0
  %850 = vmatprep.subr.mxu0 0.0
  %851 = vmatpush1.msra.mxu0 0.0
  %852 = vmatprep.subr.mxu0 0.0
  %853 = vmatpush1.msra.mxu0 0.0
  %854 = vmatprep.subr.mxu0 0.0
  %855 = vmatpush1.msra.mxu0 0.0
  %856 = vmatprep.subr.mxu0 0.0
  %857 = vmatpush1.msra.mxu0 0.0
  %858 = vmatprep.subr.mxu0 0.0
  %859 = vmatpush1.msra.mxu0 0.0
  %860 = vmatprep.subr.mxu0 0.0
  %861 = vmatpush1.msra.mxu0 0.0
  %862 = vmatprep.subr.mxu0 0.0
  %863 = vmatpush1.msra.mxu0 0.0
  %864 = vmatprep.subr.mxu0 0.0
  %865 = vmatpush1.msra.mxu0 0.0
  %866 = vmatprep.subr.mxu0 0.0
  %867 = vmatpush1.msra.mxu0 0.0
  %868 = vmatprep.subr.mxu0 0.0
  %869 = vmatpush1.msra.mxu0 %v15
  %870 = vmatprep.subr.mxu0 0.0
  %871 = vmatpush2.msra.mxu0 0.0
  %872 = vmatprep.subr.mxu0 0.0
  %873 = vmatpush2.msra.mxu0 0.0
  %874 = vmatprep.subr.mxu0 0.0
  %875 = vmatpush2.msra.mxu0 0.0
  %876 = vmatprep.subr.mxu0 0.0
  %877 = vmatpush2.msra.mxu0 0.0
  %878 = vmatprep.subr.mxu0 0.0
  %879 = vmatpush2.msra.mxu0 0.0
  %880 = vmatprep.subr.mxu0 0.0
  %881 = vmatpush2.msra.mxu0 0.0
  %882 = vmatprep.subr.mxu0 0.0
  %883 = vmatpush2.msra.mxu0 0.0
  %884 = vmatprep.subr.mxu0 0.0
  %885 = vmatpush2.msra.mxu0 0.0
  %886 = vmatprep.subr.mxu0 0.0
  %887 = vmatpush2.msra.mxu0 0.0
  %888 = vmatprep.subr.mxu0 0.0
  %889 = vmatpush2.msra.mxu0 0.0
  %890 = vmatprep.subr.mxu0 0.0
  %891 = vmatpush2.msra.mxu0 0.0
  %892 = vmatprep.subr.mxu0 0.0
  %893 = vmatpush2.msra.mxu0 0.0
  %894 = vmatprep.subr.mxu0 0.0
  %895 = vmatpush2.msra.mxu0 0.0
  %896 = vmatprep.subr.mxu0 0.0
  %897 = vmatpush2.msra.mxu0 0.0
  %898 = vmatprep.subr.mxu0 0.0
  %899 = vmatpush2.msra.mxu0 0.0
  %900 = vmatprep.subr.mxu0 0.0
  %901 = vmatpush2.msra.mxu0 0.0
  %902 = vmatprep.mubr.f32.mxu0 0.0
  %903 = vmatmul.mubr.f32.gmra.mxu0 %v836
  %v904 = vpop.f32.mrf.mxu0
  %v905 = vadd.f32 0.0, %v904
  %v906 = vpop.f32.mrf.mxu0
  %907 = vdwg.mxu0
  %v908 = vadd.f32 %v835, %v905
  %v909 = vxor.u32 %v908, 2147483648
  %v910 = vmul.f32 %v909, 1.442695
  %v911 = vpow.pop %v910
  %v912 = vadd.f32 %v911, 1.0
  %v913 = vrcp.pop %v912
  %v914 = vmul.f32 1.0, %v913
  %v915 = vtanh.pop %v908
  %v916 = vmul.f32 %v914, %v821
  %918 = vrot.lane.b32.xlu0 %v915, 112
  %v919 = vpop.permute.xlu0 %918
  %v921 = vmul.f32 %v914, %v919
  %923 = vrot.lane.b32.xlu0 %v921, 8
  %v924 = vpop.permute.xlu0 %923
  %v926 = vadd.f32 %v916, %v924
  %v927 = vtanh.pop %v926
  %929 = vrot.lane.b32.xlu0 %v927, 16
  %v930 = vpop.permute.xlu0 %929
  %v932 = vmul.f32 %v914, %v930
  %934 = vrot.lane.b32.xlu0 %v932, 104
  %v935 = vpop.permute.xlu0 %934
  %s937 = scalar_lea.vmem [#allocation3], 10
  %938 = vst.msk [vmem:[%s937] sm:$0x3] %vm412, %v935
  %s939 = scalar_lea.vmem [#allocation2], 12
  %v940 = vld [vmem:[%s939] sm:$0x3]
  %v941 = vsel %vm309, %v935, 0
  %943 = vmatprep.subr.mxu0 0.0
  %944 = vmatpush1.msra.mxu0 0.0
  %945 = vmatprep.subr.mxu0 0.0
  %946 = vmatpush1.msra.mxu0 0.0
  %947 = vmatprep.subr.mxu0 0.0
  %948 = vmatpush1.msra.mxu0 0.0
  %949 = vmatprep.subr.mxu0 0.0
  %950 = vmatpush1.msra.mxu0 0.0
  %951 = vmatprep.subr.mxu0 0.0
  %952 = vmatpush1.msra.mxu0 0.0
  %953 = vmatprep.subr.mxu0 0.0
  %954 = vmatpush1.msra.mxu0 0.0
  %955 = vmatprep.subr.mxu0 0.0
  %956 = vmatpush1.msra.mxu0 0.0
  %957 = vmatprep.subr.mxu0 0.0
  %958 = vmatpush1.msra.mxu0 0.0
  %959 = vmatprep.subr.mxu0 0.0
  %960 = vmatpush1.msra.mxu0 0.0
  %961 = vmatprep.subr.mxu0 0.0
  %962 = vmatpush1.msra.mxu0 0.0
  %963 = vmatprep.subr.mxu0 0.0
  %964 = vmatpush1.msra.mxu0 0.0
  %965 = vmatprep.subr.mxu0 0.0
  %966 = vmatpush1.msra.mxu0 0.0
  %967 = vmatprep.subr.mxu0 0.0
  %968 = vmatpush1.msra.mxu0 0.0
  %969 = vmatprep.subr.mxu0 0.0
  %970 = vmatpush1.msra.mxu0 0.0
  %971 = vmatprep.subr.mxu0 0.0
  %972 = vmatpush1.msra.mxu0 0.0
  %973 = vmatprep.subr.mxu0 0.0
  %974 = vmatpush1.msra.mxu0 %v15
  %975 = vmatprep.subr.mxu0 0.0
  %976 = vmatpush2.msra.mxu0 0.0
  %977 = vmatprep.subr.mxu0 0.0
  %978 = vmatpush2.msra.mxu0 0.0
  %979 = vmatprep.subr.mxu0 0.0
  %980 = vmatpush2.msra.mxu0 0.0
  %981 = vmatprep.subr.mxu0 0.0
  %982 = vmatpush2.msra.mxu0 0.0
  %983 = vmatprep.subr.mxu0 0.0
  %984 = vmatpush2.msra.mxu0 0.0
  %985 = vmatprep.subr.mxu0 0.0
  %986 = vmatpush2.msra.mxu0 0.0
  %987 = vmatprep.subr.mxu0 0.0
  %988 = vmatpush2.msra.mxu0 0.0
  %989 = vmatprep.subr.mxu0 0.0
  %990 = vmatpush2.msra.mxu0 0.0
  %991 = vmatprep.subr.mxu0 0.0
  %992 = vmatpush2.msra.mxu0 0.0
  %993 = vmatprep.subr.mxu0 0.0
  %994 = vmatpush2.msra.mxu0 0.0
  %995 = vmatprep.subr.mxu0 0.0
  %996 = vmatpush2.msra.mxu0 0.0
  %997 = vmatprep.subr.mxu0 0.0
  %998 = vmatpush2.msra.mxu0 0.0
  %999 = vmatprep.subr.mxu0 0.0
  %1000 = vmatpush2.msra.mxu0 0.0
  %1001 = vmatprep.subr.mxu0 0.0
  %1002 = vmatpush2.msra.mxu0 0.0
  %1003 = vmatprep.subr.mxu0 0.0
  %1004 = vmatpush2.msra.mxu0 0.0
  %1005 = vmatprep.subr.mxu0 0.0
  %1006 = vmatpush2.msra.mxu0 0.0
  %1007 = vmatprep.mubr.f32.mxu0 0.0
  %1008 = vmatmul.mubr.f32.gmra.mxu0 %v941
  %v1009 = vpop.f32.mrf.mxu0
  %v1010 = vadd.f32 0.0, %v1009
  %v1011 = vpop.f32.mrf.mxu0
  %1012 = vdwg.mxu0
  %v1013 = vadd.f32 %v940, %v1010
  %v1014 = vxor.u32 %v1013, 2147483648
  %v1015 = vmul.f32 %v1014, 1.442695
  %v1016 = vpow.pop %v1015
  %v1017 = vadd.f32 %v1016, 1.0
  %v1018 = vrcp.pop %v1017
  %v1019 = vmul.f32 1.0, %v1018
  %v1020 = vtanh.pop %v1013
  %v1021 = vmul.f32 %v1019, %v926
  %1023 = vrot.lane.b32.xlu0 %v1020, 112
  %v1024 = vpop.permute.xlu0 %1023
  %v1026 = vmul.f32 %v1019, %v1024
  %1028 = vrot.lane.b32.xlu0 %v1026, 8
  %v1029 = vpop.permute.xlu0 %1028
  %v1031 = vadd.f32 %v1021, %v1029
  %v1032 = vtanh.pop %v1031
  %1034 = vrot.lane.b32.xlu0 %v1032, 16
  %v1035 = vpop.permute.xlu0 %1034
  %v1037 = vmul.f32 %v1019, %v1035
  %1039 = vrot.lane.b32.xlu0 %v1037, 104
  %v1040 = vpop.permute.xlu0 %1039
  %s1042 = scalar_lea.vmem [#allocation3], 12
  %1043 = vst.msk [vmem:[%s1042] sm:$0x3] %vm412, %v1040
  %s1044 = scalar_lea.vmem [#allocation2], 14
  %v1045 = vld [vmem:[%s1044] sm:$0x3]
  %v1046 = vsel %vm309, %v1040, 0
  %1048 = vmatprep.subr.mxu0 0.0
  %1049 = vmatpush1.msra.mxu0 0.0
  %1050 = vmatprep.subr.mxu0 0.0
  %1051 = vmatpush1.msra.mxu0 0.0
  %1052 = vmatprep.subr.mxu0 0.0
  %1053 = vmatpush1.msra.mxu0 0.0
  %1054 = vmatprep.subr.mxu0 0.0
  %1055 = vmatpush1.msra.mxu0 0.0
  %1056 = vmatprep.subr.mxu0 0.0
  %1057 = vmatpush1.msra.mxu0 0.0
  %1058 = vmatprep.subr.mxu0 0.0
  %1059 = vmatpush1.msra.mxu0 0.0
  %1060 = vmatprep.subr.mxu0 0.0
  %1061 = vmatpush1.msra.mxu0 0.0
  %1062 = vmatprep.subr.mxu0 0.0
  %1063 = vmatpush1.msra.mxu0 0.0
  %1064 = vmatprep.subr.mxu0 0.0
  %1065 = vmatpush1.msra.mxu0 0.0
  %1066 = vmatprep.subr.mxu0 0.0
  %1067 = vmatpush1.msra.mxu0 0.0
  %1068 = vmatprep.subr.mxu0 0.0
  %1069 = vmatpush1.msra.mxu0 0.0
  %1070 = vmatprep.subr.mxu0 0.0
  %1071 = vmatpush1.msra.mxu0 0.0
  %1072 = vmatprep.subr.mxu0 0.0
  %1073 = vmatpush1.msra.mxu0 0.0
  %1074 = vmatprep.subr.mxu0 0.0
  %1075 = vmatpush1.msra.mxu0 0.0
  %1076 = vmatprep.subr.mxu0 0.0
  %1077 = vmatpush1.msra.mxu0 0.0
  %1078 = vmatprep.subr.mxu0 0.0
  %1079 = vmatpush1.msra.mxu0 %v15
  %1080 = vmatprep.subr.mxu0 0.0
  %1081 = vmatpush2.msra.mxu0 0.0
  %1082 = vmatprep.subr.mxu0 0.0
  %1083 = vmatpush2.msra.mxu0 0.0
  %1084 = vmatprep.subr.mxu0 0.0
  %1085 = vmatpush2.msra.mxu0 0.0
  %1086 = vmatprep.subr.mxu0 0.0
  %1087 = vmatpush2.msra.mxu0 0.0
  %1088 = vmatprep.subr.mxu0 0.0
  %1089 = vmatpush2.msra.mxu0 0.0
  %1090 = vmatprep.subr.mxu0 0.0
  %1091 = vmatpush2.msra.mxu0 0.0
  %1092 = vmatprep.subr.mxu0 0.0
  %1093 = vmatpush2.msra.mxu0 0.0
  %1094 = vmatprep.subr.mxu0 0.0
  %1095 = vmatpush2.msra.mxu0 0.0
  %1096 = vmatprep.subr.mxu0 0.0
  %1097 = vmatpush2.msra.mxu0 0.0
  %1098 = vmatprep.subr.mxu0 0.0
  %1099 = vmatpush2.msra.mxu0 0.0
  %1100 = vmatprep.subr.mxu0 0.0
  %1101 = vmatpush2.msra.mxu0 0.0
  %1102 = vmatprep.subr.mxu0 0.0
  %1103 = vmatpush2.msra.mxu0 0.0
  %1104 = vmatprep.subr.mxu0 0.0
  %1105 = vmatpush2.msra.mxu0 0.0
  %1106 = vmatprep.subr.mxu0 0.0
  %1107 = vmatpush2.msra.mxu0 0.0
  %1108 = vmatprep.subr.mxu0 0.0
  %1109 = vmatpush2.msra.mxu0 0.0
  %1110 = vmatprep.subr.mxu0 0.0
  %1111 = vmatpush2.msra.mxu0 0.0
  %1112 = vmatprep.mubr.f32.mxu0 0.0
  %1113 = vmatmul.mubr.f32.gmra.mxu0 %v1046
  %v1114 = vpop.f32.mrf.mxu0
  %v1115 = vadd.f32 0.0, %v1114
  %v1116 = vpop.f32.mrf.mxu0
  %1117 = vdwg.mxu0
  %v1118 = vadd.f32 %v1045, %v1115
  %v1119 = vxor.u32 %v1118, 2147483648
  %v1120 = vmul.f32 %v1119, 1.442695
  %v1121 = vpow.pop %v1120
  %v1122 = vadd.f32 %v1121, 1.0
  %v1123 = vrcp.pop %v1122
  %v1124 = vmul.f32 1.0, %v1123
  %v1125 = vtanh.pop %v1118
  %v1126 = vmul.f32 %v1124, %v1031
  %1128 = vrot.lane.b32.xlu0 %v1125, 112
  %v1129 = vpop.permute.xlu0 %1128
  %v1131 = vmul.f32 %v1124, %v1129
  %1133 = vrot.lane.b32.xlu0 %v1131, 8
  %v1134 = vpop.permute.xlu0 %1133
  %v1136 = vadd.f32 %v1126, %v1134
  %v1137 = vtanh.pop %v1136
  %1139 = vrot.lane.b32.xlu0 %v1137, 16
  %v1140 = vpop.permute.xlu0 %1139
  %v1142 = vmul.f32 %v1124, %v1140
  %1144 = vrot.lane.b32.xlu0 %v1142, 104
  %v1145 = vpop.permute.xlu0 %1144
  %s1147 = scalar_lea.vmem [#allocation3], 14
  %1148 = vst.msk [vmem:[%s1147] sm:$0x3] %vm412, %v1145
  %v1149 = vld [vmem:[#allocation3] sm:$0x1]
  %v1150 = vld [vmem:[#allocation3 + $0x2] sm:$0x1]
  %v1151 = vld [vmem:[#allocation3 + $0x4] sm:$0x1]
  %v1152 = vld [vmem:[#allocation3 + $0x6] sm:$0x1]
  %v1153 = vld [vmem:[#allocation3 + $0x8] sm:$0x1]
  %v1154 = vld [vmem:[#allocation3 + $0xa] sm:$0x1]
  %v1155 = vld [vmem:[#allocation3 + $0xc] sm:$0x1]
  %v1156 = vld [vmem:[#allocation3 + $0xe] sm:$0x1]
  %v1157 = vld [vmem:[#allocation3 + $0x1] sm:$0x1]
  %v1158 = vld [vmem:[#allocation3 + $0x3] sm:$0x1]
  %v1159 = vld [vmem:[#allocation3 + $0x5] sm:$0x1]
  %v1160 = vld [vmem:[#allocation3 + $0x7] sm:$0x1]
  %v1161 = vld [vmem:[#allocation3 + $0x9] sm:$0x1]
  %v1162 = vld [vmem:[#allocation3 + $0xb] sm:$0x1]
  %v1163 = vld [vmem:[#allocation3 + $0xd] sm:$0x1]
  %v1164 = vld [vmem:[#allocation3 + $0xf] sm:$0x1]
  %v1173 = vrot.slane %v1150, 7
  %vm1174 = vcmask 1041409
  %v1175 = vsel %vm1174, %v1173, %v1149
  %v1176 = vrot.slane %v1151, 6
  %vm1177 = vcmask 1042434
  %v1178 = vsel %vm1177, %v1176, %v1175
  %v1179 = vrot.slane %v1152, 5
  %vm1180 = vcmask 1043459
  %v1181 = vsel %vm1180, %v1179, %v1178
  %v1182 = vrot.slane %v1153, 4
  %vm1183 = vcmask 1044484
  %v1184 = vsel %vm1183, %v1182, %v1181
  %v1185 = vrot.slane %v1154, 3
  %vm1186 = vcmask 1045509
  %v1187 = vsel %vm1186, %v1185, %v1184
  %v1188 = vrot.slane %v1155, 2
  %vm1189 = vcmask 1046534
  %v1190 = vsel %vm1189, %v1188, %v1187
  %v1191 = vrot.slane %v1156, 1
  %vm1192 = vcmask 1047559
  %v1193 = vsel %vm1192, %v1191, %v1190
  %v1203 = vrot.slane %v1158, 7
  %v1204 = vsel %vm1174, %v1203, %v1157
  %v1205 = vrot.slane %v1159, 6
  %v1206 = vsel %vm1177, %v1205, %v1204
  %v1207 = vrot.slane %v1160, 5
  %v1208 = vsel %vm1180, %v1207, %v1206
  %v1209 = vrot.slane %v1161, 4
  %v1210 = vsel %vm1183, %v1209, %v1208
  %v1211 = vrot.slane %v1162, 3
  %v1212 = vsel %vm1186, %v1211, %v1210
  %v1213 = vrot.slane %v1163, 2
  %v1214 = vsel %vm1189, %v1213, %v1212
  %v1215 = vrot.slane %v1164, 1
  %v1216 = vsel %vm1192, %v1215, %v1214
  %v1218 = vld [vmem:[%s2] sm:$0xff]
  %v1219 = vld [vmem:[%s2 + $0x8] sm:$0x1f]
  %v1220 = vld [vmem:[%s2 + $0x10] sm:$0x1f]
  %v1221 = vld [vmem:[%s2 + $0xd] sm:$0x1]
  %v1222 = vld [vmem:[%s2 + $0xe] sm:$0x1]
  %v1223 = vld [vmem:[%s2 + $0xf] sm:$0x1]
  %v1224 = vmax.f32 %v1193, 0.0
  %v1225 = vmax.f32 %v1216, 0.0
  %v1226 = vlaneseq
  %v1227 = vshrl.u32 %v1226, 7
  %v1228 = vsub.s32 0, %v1227
  %v1229 = vrot.slane %v1221, %v1228
  %v1231 = vsel %vm309, %v1224, 0
  %v1234 = vsel %vm309, %v1225, 0
  %1236 = vmatprep.subr.mxu0 0.0
  %1237 = vmatpush1.msra.mxu0 0.0
  %1238 = vmatprep.subr.mxu0 0.0
  %1239 = vmatpush1.msra.mxu0 0.0
  %1240 = vmatprep.subr.mxu0 0.0
  %1241 = vmatpush1.msra.mxu0 0.0
  %1242 = vmatprep.subr.mxu0 0.0
  %1243 = vmatpush1.msra.mxu0 0.0
  %1244 = vmatprep.subr.mxu0 0.0
  %1245 = vmatpush1.msra.mxu0 0.0
  %1246 = vmatprep.subr.mxu0 0.0
  %1247 = vmatpush1.msra.mxu0 0.0
  %1248 = vmatprep.subr.mxu0 0.0
  %1249 = vmatpush1.msra.mxu0 0.0
  %1250 = vmatprep.subr.mxu0 0.0
  %1251 = vmatpush1.msra.mxu0 0.0
  %1252 = vmatprep.subr.mxu0 0.0
  %1253 = vmatpush1.msra.mxu0 0.0
  %1254 = vmatprep.subr.mxu0 0.0
  %1255 = vmatpush1.msra.mxu0 0.0
  %1256 = vmatprep.subr.mxu0 0.0
  %1257 = vmatpush1.msra.mxu0 0.0
  %1258 = vmatprep.subr.mxu0 0.0
  %1259 = vmatpush1.msra.mxu0 0.0
  %1260 = vmatprep.subr.mxu0 0.0
  %1261 = vmatpush1.msra.mxu0 0.0
  %1262 = vmatprep.subr.mxu0 0.0
  %1263 = vmatpush1.msra.mxu0 0.0
  %1264 = vmatprep.subr.mxu0 0.0
  %1265 = vmatpush1.msra.mxu0 0.0
  %1266 = vmatprep.subr.mxu0 0.0
  %1267 = vmatpush1.msra.mxu0 %v1218
  %1268 = vmatprep.subr.mxu0 0.0
  %1269 = vmatpush2.msra.mxu0 0.0
  %1270 = vmatprep.subr.mxu0 0.0
  %1271 = vmatpush2.msra.mxu0 0.0
  %1272 = vmatprep.subr.mxu0 0.0
  %1273 = vmatpush2.msra.mxu0 0.0
  %1274 = vmatprep.subr.mxu0 0.0
  %1275 = vmatpush2.msra.mxu0 0.0
  %1276 = vmatprep.subr.mxu0 0.0
  %1277 = vmatpush2.msra.mxu0 0.0
  %1278 = vmatprep.subr.mxu0 0.0
  %1279 = vmatpush2.msra.mxu0 0.0
  %1280 = vmatprep.subr.mxu0 0.0
  %1281 = vmatpush2.msra.mxu0 0.0
  %1282 = vmatprep.subr.mxu0 0.0
  %1283 = vmatpush2.msra.mxu0 0.0
  %1284 = vmatprep.subr.mxu0 0.0
  %1285 = vmatpush2.msra.mxu0 0.0
  %1286 = vmatprep.subr.mxu0 0.0
  %1287 = vmatpush2.msra.mxu0 0.0
  %1288 = vmatprep.subr.mxu0 0.0
  %1289 = vmatpush2.msra.mxu0 0.0
  %1290 = vmatprep.subr.mxu0 0.0
  %1291 = vmatpush2.msra.mxu0 0.0
  %1292 = vmatprep.subr.mxu0 0.0
  %1293 = vmatpush2.msra.mxu0 0.0
  %1294 = vmatprep.subr.mxu0 0.0
  %1295 = vmatpush2.msra.mxu0 0.0
  %1296 = vmatprep.subr.mxu0 0.0
  %1297 = vmatpush2.msra.mxu0 0.0
  %1298 = vmatprep.subr.mxu0 0.0
  %1299 = vmatpush2.msra.mxu0 0.0
  %1300 = vmatprep.mubr.f32.mxu0 0.0
  %1301 = vmatmul.mubr.f32.gmra.mxu0 %v1231
  %v1302 = vpop.f32.mrf.mxu0
  %v1303 = vadd.f32 %v1229, %v1302
  %v1304 = vpop.f32.mrf.mxu0
  %1305 = vmatprep.mubr.f32.mxu0 0.0
  %1306 = vmatmul.mubr.f32.gmra.mxu0 %v1234
  %v1307 = vpop.f32.mrf.mxu0
  %v1308 = vadd.f32 %v1229, %v1307
  %v1309 = vpop.f32.mrf.mxu0
  %1310 = vdwg.mxu0
  %v1311 = vmax.f32 %v1303, 0.0
  %v1312 = vmax.f32 %v1308, 0.0
  %v1313 = vlaneseq
  %v1314 = vshrl.u32 %v1313, 7
  %v1315 = vsub.s32 0, %v1314
  %v1316 = vrot.slane %v1222, %v1315
  %vm1317 = vcmask 39936
  %v1319 = vsel %vm1317, %v1311, 0
  %v1322 = vsel %vm1317, %v1312, 0
  %vm1324 = vcmask 1044480
  %v1326 = vsel %vm1324, %v1219, 0
  %1328 = vmatprep.subr.mxu0 0.0
  %1329 = vmatpush1.msra.mxu0 0.0
  %1330 = vmatprep.subr.mxu0 0.0
  %1331 = vmatpush1.msra.mxu0 0.0
  %1332 = vmatprep.subr.mxu0 0.0
  %1333 = vmatpush1.msra.mxu0 0.0
  %1334 = vmatprep.subr.mxu0 0.0
  %1335 = vmatpush1.msra.mxu0 0.0
  %1336 = vmatprep.subr.mxu0 0.0
  %1337 = vmatpush1.msra.mxu0 0.0
  %1338 = vmatprep.subr.mxu0 0.0
  %1339 = vmatpush1.msra.mxu0 0.0
  %1340 = vmatprep.subr.mxu0 0.0
  %1341 = vmatpush1.msra.mxu0 0.0
  %1342 = vmatprep.subr.mxu0 0.0
  %1343 = vmatpush1.msra.mxu0 0.0
  %1344 = vmatprep.subr.mxu0 0.0
  %1345 = vmatpush1.msra.mxu0 0.0
  %1346 = vmatprep.subr.mxu0 0.0
  %1347 = vmatpush1.msra.mxu0 0.0
  %1348 = vmatprep.subr.mxu0 0.0
  %1349 = vmatpush1.msra.mxu0 0.0
  %1350 = vmatprep.subr.mxu0 0.0
  %1351 = vmatpush1.msra.mxu0 0.0
  %1352 = vmatprep.subr.mxu0 0.0
  %1353 = vmatpush1.msra.mxu0 0.0
  %1354 = vmatprep.subr.mxu0 0.0
  %1355 = vmatpush1.msra.mxu0 0.0
  %1356 = vmatprep.subr.mxu0 0.0
  %1357 = vmatpush1.msra.mxu0 0.0
  %1358 = vmatprep.subr.mxu0 0.0
  %1359 = vmatpush1.msra.mxu0 %v1326
  %1360 = vmatprep.subr.mxu0 0.0
  %1361 = vmatpush2.msra.mxu0 0.0
  %1362 = vmatprep.subr.mxu0 0.0
  %1363 = vmatpush2.msra.mxu0 0.0
  %1364 = vmatprep.subr.mxu0 0.0
  %1365 = vmatpush2.msra.mxu0 0.0
  %1366 = vmatprep.subr.mxu0 0.0
  %1367 = vmatpush2.msra.mxu0 0.0
  %1368 = vmatprep.subr.mxu0 0.0
  %1369 = vmatpush2.msra.mxu0 0.0
  %1370 = vmatprep.subr.mxu0 0.0
  %1371 = vmatpush2.msra.mxu0 0.0
  %1372 = vmatprep.subr.mxu0 0.0
  %1373 = vmatpush2.msra.mxu0 0.0
  %1374 = vmatprep.subr.mxu0 0.0
  %1375 = vmatpush2.msra.mxu0 0.0
  %1376 = vmatprep.subr.mxu0 0.0
  %1377 = vmatpush2.msra.mxu0 0.0
  %1378 = vmatprep.subr.mxu0 0.0
  %1379 = vmatpush2.msra.mxu0 0.0
  %1380 = vmatprep.subr.mxu0 0.0
  %1381 = vmatpush2.msra.mxu0 0.0
  %1382 = vmatprep.subr.mxu0 0.0
  %1383 = vmatpush2.msra.mxu0 0.0
  %1384 = vmatprep.subr.mxu0 0.0
  %1385 = vmatpush2.msra.mxu0 0.0
  %1386 = vmatprep.subr.mxu0 0.0
  %1387 = vmatpush2.msra.mxu0 0.0
  %1388 = vmatprep.subr.mxu0 0.0
  %1389 = vmatpush2.msra.mxu0 0.0
  %1390 = vmatprep.subr.mxu0 0.0
  %1391 = vmatpush2.msra.mxu0 0.0
  %1392 = vmatprep.mubr.f32.mxu0 0.0
  %1393 = vmatmul.mubr.f32.gmra.mxu0 %v1319
  %v1394 = vpop.f32.mrf.mxu0
  %v1395 = vadd.f32 %v1316, %v1394
  %v1396 = vpop.f32.mrf.mxu0
  %1397 = vmatprep.mubr.f32.mxu0 0.0
  %1398 = vmatmul.mubr.f32.gmra.mxu0 %v1322
  %v1399 = vpop.f32.mrf.mxu0
  %v1400 = vadd.f32 %v1316, %v1399
  %v1401 = vpop.f32.mrf.mxu0
  %1402 = vdwg.mxu0
  %v1403 = vmax.f32 %v1395, 0.0
  %v1404 = vmax.f32 %v1400, 0.0
  %v1405 = vlaneseq
  %v1406 = vshrl.u32 %v1405, 7
  %v1407 = vsub.s32 0, %v1406
  %v1408 = vrot.slane %v1223, %v1407
  %v1410 = vsel %vm1317, %v1403, 0
  %v1413 = vsel %vm1317, %v1404, 0
  %v1416 = vsel %vm1324, %v1220, 0
  %1418 = vmatprep.subr.mxu0 0.0
  %1419 = vmatpush1.msra.mxu0 0.0
  %1420 = vmatprep.subr.mxu0 0.0
  %1421 = vmatpush1.msra.mxu0 0.0
  %1422 = vmatprep.subr.mxu0 0.0
  %1423 = vmatpush1.msra.mxu0 0.0
  %1424 = vmatprep.subr.mxu0 0.0
  %1425 = vmatpush1.msra.mxu0 0.0
  %1426 = vmatprep.subr.mxu0 0.0
  %1427 = vmatpush1.msra.mxu0 0.0
  %1428 = vmatprep.subr.mxu0 0.0
  %1429 = vmatpush1.msra.mxu0 0.0
  %1430 = vmatprep.subr.mxu0 0.0
  %1431 = vmatpush1.msra.mxu0 0.0
  %1432 = vmatprep.subr.mxu0 0.0
  %1433 = vmatpush1.msra.mxu0 0.0
  %1434 = vmatprep.subr.mxu0 0.0
  %1435 = vmatpush1.msra.mxu0 0.0
  %1436 = vmatprep.subr.mxu0 0.0
  %1437 = vmatpush1.msra.mxu0 0.0
  %1438 = vmatprep.subr.mxu0 0.0
  %1439 = vmatpush1.msra.mxu0 0.0
  %1440 = vmatprep.subr.mxu0 0.0
  %1441 = vmatpush1.msra.mxu0 0.0
  %1442 = vmatprep.subr.mxu0 0.0
  %1443 = vmatpush1.msra.mxu0 0.0
  %1444 = vmatprep.subr.mxu0 0.0
  %1445 = vmatpush1.msra.mxu0 0.0
  %1446 = vmatprep.subr.mxu0 0.0
  %1447 = vmatpush1.msra.mxu0 0.0
  %1448 = vmatprep.subr.mxu0 0.0
  %1449 = vmatpush1.msra.mxu0 %v1416
  %1450 = vmatprep.subr.mxu0 0.0
  %1451 = vmatpush2.msra.mxu0 0.0
  %1452 = vmatprep.subr.mxu0 0.0
  %1453 = vmatpush2.msra.mxu0 0.0
  %1454 = vmatprep.subr.mxu0 0.0
  %1455 = vmatpush2.msra.mxu0 0.0
  %1456 = vmatprep.subr.mxu0 0.0
  %1457 = vmatpush2.msra.mxu0 0.0
  %1458 = vmatprep.subr.mxu0 0.0
  %1459 = vmatpush2.msra.mxu0 0.0
  %1460 = vmatprep.subr.mxu0 0.0
  %1461 = vmatpush2.msra.mxu0 0.0
  %1462 = vmatprep.subr.mxu0 0.0
  %1463 = vmatpush2.msra.mxu0 0.0
  %1464 = vmatprep.subr.mxu0 0.0
  %1465 = vmatpush2.msra.mxu0 0.0
  %1466 = vmatprep.subr.mxu0 0.0
  %1467 = vmatpush2.msra.mxu0 0.0
  %1468 = vmatprep.subr.mxu0 0.0
  %1469 = vmatpush2.msra.mxu0 0.0
  %1470 = vmatprep.subr.mxu0 0.0
  %1471 = vmatpush2.msra.mxu0 0.0
  %1472 = vmatprep.subr.mxu0 0.0
  %1473 = vmatpush2.msra.mxu0 0.0
  %1474 = vmatprep.subr.mxu0 0.0
  %1475 = vmatpush2.msra.mxu0 0.0
  %1476 = vmatprep.subr.mxu0 0.0
  %1477 = vmatpush2.msra.mxu0 0.0
  %1478 = vmatprep.subr.mxu0 0.0
  %1479 = vmatpush2.msra.mxu0 0.0
  %1480 = vmatprep.subr.mxu0 0.0
  %1481 = vmatpush2.msra.mxu0 0.0
  %1482 = vmatprep.mubr.f32.mxu0 0.0
  %1483 = vmatmul.mubr.f32.gmra.mxu0 %v1410
  %v1484 = vpop.f32.mrf.mxu0
  %v1485 = vadd.f32 %v1408, %v1484
  %v1486 = vpop.f32.mrf.mxu0
  %1487 = vmatprep.mubr.f32.mxu0 0.0
  %1488 = vmatmul.mubr.f32.gmra.mxu0 %v1413
  %v1489 = vpop.f32.mrf.mxu0
  %v1490 = vadd.f32 %v1408, %v1489
  %v1491 = vpop.f32.mrf.mxu0
  %1492 = vdwg.mxu0
  %vm1493 = vcmask 7168
  %1494 = vst.msk [vmem:[%s3] sm:$0xff] %vm1493, %v1485
  %1495 = vst.msk [vmem:[%s3 + $0x8] sm:$0xff] %vm1493, %v1490
  // Predicated region
  $region14: #{tpu_custom_call.1} parent=0 // pred_check
    _
  $region15: #{tpu_custom_call.1} parent=0 // pred_check_branch
    %1497 = sbr.rel (0) target = $region17
  $region16: #{tpu_custom_call.1} parent=0 // pred_region
    _
  $region17: #{tpu_custom_call.1} parent=0 // pred_fallthru
    _
  // Predicated region
  $region18: #{tpu_custom_call.1} parent=0 // pred_check
    _
  $region19: #{tpu_custom_call.1} parent=0 // pred_check_branch
    %1499 = sbr.rel (0) target = $region21
  $region20: #{tpu_custom_call.1} parent=0 // pred_region
    _
  $region21: #{tpu_custom_call.1} parent=0 // pred_fallthru
    _

</llo_original>
